<compile_context>
chip_gen: v7x
topology: tpu7x:2x2x1
jax: 0.10.0
libtpu: 0.0.40
codegen_flags: <defaults>
</compile_context>

<pallas_src>
import jax
import jax.numpy as jnp
from jax.experimental import pallas as pl
from jax.experimental.pallas import tpu as pltpu

LANE = 128      # TPU lane width
BN_EPS = 1e-5


# ----------------------------------------------------------------------------
# small helpers (setup-time glue)
# ----------------------------------------------------------------------------
def _round_up(x, m):
    return ((x + m - 1) // m) * m


def _bn_affine(bn):
    """Fold eval-mode BatchNorm into per-channel scale/shift."""
    scale = bn["gamma"] / jnp.sqrt(bn["var"] + BN_EPS)
    shift = bn["beta"] - bn["mean"] * scale
    return scale, shift


def _pad_vec(v, n, value=0.0):
    v = v.astype(jnp.float32)
    pad = n - v.shape[0]
    if pad == 0:
        return v
    return jnp.pad(v, (0, pad), constant_values=value)


def _pad_conv_weight(w_torch, cpo, cpi):
    """(cout, cin, kh, kw) torch weight -> (kh*kw*cpi, cpo) bf16, zero padded."""
    cout, cin = w_torch.shape[0], w_torch.shape[1]
    w = jnp.pad(w_torch, ((0, cpo - cout), (0, cpi - cin), (0, 0), (0, 0)))
    w = jnp.transpose(w, (2, 3, 1, 0)).reshape(-1, cpo)   # tap-major, cin-minor
    return w.astype(jnp.bfloat16)


def _patches_3x3(x_padded, stride):
    """im2col for a 3x3 conv.  `x_padded` already carries the 1-pixel border.

    Returns bf16 patches of shape (N*Ho*Wo, 9*C) (tap-major, channel-minor)
    and the output spatial shape.
    """
    n, hp, wp, c = x_padded.shape
    h, w = hp - 2, wp - 2
    ho = (h - 1) // stride + 1
    wo = (w - 1) // stride + 1
    xq = x_padded.astype(jnp.bfloat16)
    cols = []
    for kh in range(3):
        for kw in range(3):
            cols.append(xq[:,
                           kh:kh + (ho - 1) * stride + 1:stride,
                           kw:kw + (wo - 1) * stride + 1:stride,
                           :])
    patches = jnp.concatenate(cols, axis=-1).reshape(n * ho * wo, 9 * c)
    return patches, (n, ho, wo)


# ----------------------------------------------------------------------------
# fused matmul kernel family
# ----------------------------------------------------------------------------
def _make_matmul_kernel(pre_bn, post_bn, post_relu, has_res):
    """o = [relu]((relu(a*ps+pt) if pre_bn else a) @ b * qs + qt) + res."""
    def kernel(*refs):
        idx = 0
        a_ref = refs[idx]; idx += 1
        b_ref = refs[idx]; idx += 1
        if pre_bn:
            ps_ref, pt_ref = refs[idx], refs[idx + 1]; idx += 2
        if post_bn:
            qs_ref, qt_ref = refs[idx], refs[idx + 1]; idx += 2
        if has_res:
            res_ref = refs[idx]; idx += 1
        o_ref = refs[idx]
        acc_ref = refs[idx + 1]

        k = pl.program_id(1)

        @pl.when(k == 0)
        def _():
            acc_ref[...] = jnp.zeros_like(acc_ref)

        a = a_ref[...]
        if pre_bn:
            a = jnp.maximum(a.astype(jnp.float32) * ps_ref[...] + pt_ref[...],
                            0.0).astype(jnp.bfloat16)
        acc_ref[...] += jnp.dot(a, b_ref[...],
                                preferred_element_type=jnp.float32)

        @pl.when(k == pl.num_programs(1) - 1)
        def _():
            y = acc_ref[...]
            if post_bn:
                y = y * qs_ref[...] + qt_ref[...]
            if post_relu:
                y = jnp.maximum(y, 0.0)
            if has_res:
                y = y + res_ref[...].astype(jnp.float32)
            o_ref[...] = y.astype(o_ref.dtype)

    return kernel


def fused_matmul(a, b, *, pre_scale=None, pre_shift=None,
                 post_scale=None, post_shift=None, res=None,
                 relu_out=False, k_tiles=1, out_dtype=jnp.float32):
    """Fused (pre-BN-ReLU) matmul (post-BN-ReLU / residual-add).

    a: (M, K) bf16 with K % (128 * k_tiles) == 0,  b: (K, N) bf16 with N % 128 == 0.
    Accumulation is f32; epilogue is f32.
    """
    m, kdim = a.shape
    ndim = b.shape[1]
    assert kdim % k_tiles == 0
    tk = kdim // k_tiles
    assert tk % LANE == 0 and ndim % LANE == 0, (tk, ndim)

    pre_bn = pre_scale is not None
    post_bn = post_scale is not None
    has_res = res is not None

    # Row tiling: cap at 512 rows, aim for >=2 tiles (v7x dual TensorCore).
    tm = min(512, max(16, _round_up(pl.cdiv(m, 2), 16)))
    mp = _round_up(m, tm)
    if mp != m:
        a = jnp.pad(a, ((0, mp - m), (0, 0)))
        if has_res:
            res = jnp.pad(res, ((0, mp - m), (0, 0)))

    args = [a.astype(jnp.bfloat16), b.astype(jnp.bfloat16)]
    in_specs = [pl.BlockSpec((tm, tk), lambda i, k: (i, k)),
                pl.BlockSpec((tk, ndim), lambda i, k: (k, 0))]
    if pre_bn:
        args += [pre_scale.reshape(1, kdim).astype(jnp.float32),
                 pre_shift.reshape(1, kdim).astype(jnp.float32)]
        in_specs += [pl.BlockSpec((1, tk), lambda i, k: (0, k)),
                     pl.BlockSpec((1, tk), lambda i, k: (0, k))]
    if post_bn:
        args += [post_scale.reshape(1, ndim).astype(jnp.float32),
                 post_shift.reshape(1, ndim).astype(jnp.float32)]
        in_specs += [pl.BlockSpec((1, ndim), lambda i, k: (0, 0)),
                     pl.BlockSpec((1, ndim), lambda i, k: (0, 0))]
    if has_res:
        args += [res.astype(jnp.float32)]
        in_specs += [pl.BlockSpec((tm, ndim), lambda i, k: (i, 0))]

    out = pl.pallas_call(
        _make_matmul_kernel(pre_bn, post_bn, relu_out, has_res),
        out_shape=jax.ShapeDtypeStruct((mp, ndim), out_dtype),
        grid_spec=pltpu.PrefetchScalarGridSpec(
            num_scalar_prefetch=0,
            grid=(mp // tm, k_tiles),
            in_specs=in_specs,
            out_specs=pl.BlockSpec((tm, ndim), lambda i, k: (i, 0)),
            scratch_shapes=[pltpu.VMEM((tm, ndim), jnp.float32)]),
        compiler_params=pltpu.CompilerParams(
            dimension_semantics=("parallel", "arbitrary"),
            vmem_limit_bytes=32 * 1024 * 1024),
    )(*args)
    return out if mp == m else out[:m]


# ----------------------------------------------------------------------------
# BasicBlock / NetworkBlock forward (Pallas-backed, channel-padded layout)
# ----------------------------------------------------------------------------
def _prepare_block(p, cin, cout, stride):
    """Fold BN, pad weights / BN vectors to lane-multiple channel counts."""
    cpi = _round_up(cin, LANE)
    cpo = _round_up(cout, LANE)
    s1, t1 = _bn_affine(p["bn1"])
    s2, t2 = _bn_affine(p["bn2"])
    s1 = _pad_vec(s1, cpi, 1.0)
    t1 = _pad_vec(t1, cpi, 0.0)
    s2 = _pad_vec(s2, cpo, 0.0)
    t2 = _pad_vec(t2, cpo, 0.0)
    # per-channel input value that bn1+relu maps to exactly 0 (used as the
    # conv1 spatial-padding value so bn1+relu can be fused inside the kernel).
    # TODO(synk): a degenerate BN scale == 0 would need explicit border masking.
    safe_s1 = jnp.where(jnp.abs(s1) < 1e-12, 1.0, s1)
    blk = dict(
        equal=(cin == cout and stride == 1),
        s1=s1, t1=t1, s2=s2, t2=t2,
        neutral1=-t1 / safe_s1,
        w1=_pad_conv_weight(p["conv1"], cpo, cpi),
        w2=_pad_conv_weight(p["conv2"], cpo, cpo),
    )
    if "convShortcut" in p:
        blk["wsc"] = _pad_conv_weight(p["convShortcut"], cpo, cpi)
    return blk


def basic_block_forward(x, blk, stride):
    """x: (N, H, W, Cp_in) f32, channels already zero-padded to a lane multiple."""
    n, h, w, cpi = x.shape
    cpo = blk["w1"].shape[1]
    s1, t1 = blk["s1"], blk["t1"]

    # conv1 (3x3, stride): bn1+relu fused onto the input tile, bn2+relu fused
    # onto the output tile.  The conv border must be zero *after* bn1+relu, so
    # pad x spatially with the per-channel neutral value.
    neutral = blk["neutral1"]
    xp = jnp.pad(x - neutral, ((0, 0), (1, 1), (1, 1), (0, 0))) + neutral
    patches1, (_, ho, wo) = _patches_3x3(xp, stride)
    h1 = fused_matmul(patches1, blk["w1"],
                      pre_scale=jnp.tile(s1, 9), pre_shift=jnp.tile(t1, 9),
                      post_scale=blk["s2"], post_shift=blk["t2"],
                      relu_out=True, k_tiles=9, out_dtype=jnp.bfloat16)

    # TODO(synk): training-mode dropout (drop_rate > 0) would need in-kernel PRNG.

    # residual branch
    if blk["equal"]:
        res = x.reshape(-1, cpo)                       # PyTorch: residual is raw x
    else:
        # shortcut sees relu(bn1(x)); fuse that onto the 1x1-matmul input tile
        xs = x[:, ::stride, ::stride, :].reshape(-1, cpi).astype(jnp.bfloat16)
        res = fused_matmul(xs, blk["wsc"],
                           pre_scale=s1, pre_shift=t1,
                           k_tiles=1, out_dtype=jnp.float32)

    # conv2 (3x3, stride 1) + residual add.  h1 is post-ReLU, so plain zero
    # padding of its border is already correct.
    h1p = jnp.pad(h1.reshape(n, ho, wo, cpo), ((0, 0), (1, 1), (1, 1), (0, 0)))
    patches2, _ = _patches_3x3(h1p, 1)
    out = fused_matmul(patches2, blk["w2"], res=res,
                       k_tiles=9, out_dtype=jnp.float32)
    return out.reshape(n, ho, wo, cpo)


def network_block_forward(x_nchw, layer_params, stride, drop_rate):
    del drop_rate                                      # identity (eval / p == 0)
    x = jnp.transpose(x_nchw, (0, 2, 3, 1)).astype(jnp.float32)   # NCHW -> NHWC
    cin = x.shape[-1]
    cpi = _round_up(cin, LANE)
    if cpi != cin:                                     # pad channels once at entry
        x = jnp.pad(x, ((0, 0), (0, 0), (0, 0), (0, cpi - cin)))
    for i, p in enumerate(layer_params):
        s = stride if i == 0 else 1
        cout = p["conv1"].shape[0]
        blk = _prepare_block(p, cin, cout, s)
        x = basic_block_forward(x, blk, s)
        cin = cout
    x = x[..., :cin]                                   # slice channels once at exit
    return jnp.transpose(x, (0, 3, 1, 2))              # NHWC -> NCHW


# ----------------------------------------------------------------------------
# deterministic parameter construction
# ----------------------------------------------------------------------------
def make_bn_params(key, c):
    k1, k2, k3, k4 = jax.random.split(key, 4)
    return dict(
        gamma=1.0 + 0.1 * jax.random.normal(k1, (c,), jnp.float32),
        beta=0.1 * jax.random.normal(k2, (c,), jnp.float32),
        mean=0.1 * jax.random.normal(k3, (c,), jnp.float32),
        var=0.5 + jax.random.uniform(k4, (c,), jnp.float32),
    )


def make_block_params(key, cin, cout, stride):
    ks = jax.random.split(key, 5)
    p = dict(
        bn1=make_bn_params(ks[0], cin),
        conv1=0.1 * jax.random.normal(ks[1], (cout, cin, 3, 3), jnp.float32),
        bn2=make_bn_params(ks[2], cout),
        conv2=0.1 * jax.random.normal(ks[3], (cout, cout, 3, 3), jnp.float32),
    )
    if not (cin == cout and stride == 1):
        p["convShortcut"] = 0.1 * jax.random.normal(
            ks[4], (cout, cin, 1, 1), jnp.float32)
    return p


# ----------------------------------------------------------------------------
# pure-JAX f32 reference (for correctness check)
# ----------------------------------------------------------------------------
def _conv_ref(x_nhwc, w_torch, stride, pad):
    w_hwio = jnp.transpose(w_torch, (2, 3, 1, 0))
    return jax.lax.conv_general_dilated(
        x_nhwc, w_hwio, (stride, stride), ((pad, pad), (pad, pad)),
        dimension_numbers=("NHWC", "HWIO", "NHWC"))


def _bn_ref(x_nhwc, bn):
    s, t = _bn_affine(bn)
    return x_nhwc * s + t


def network_block_ref(x_nchw, layer_params, stride):
    x = jnp.transpose(x_nchw, (0, 2, 3, 1))
    for i, p in enumerate(layer_params):
        s = stride if i == 0 else 1
        cin = x.shape[-1]
        cout = p["conv1"].shape[0]
        equal = (cin == cout) and (s == 1)
        act = jax.nn.relu(_bn_ref(x, p["bn1"]))
        if not equal:
            x = act
        out = _conv_ref(act, p["conv1"], s, 1)
        out = jax.nn.relu(_bn_ref(out, p["bn2"]))
        out = _conv_ref(out, p["conv2"], 1, 1)
        if equal:
            x = x + out
        else:
            x = _conv_ref(x, p["convShortcut"], s, 0) + out
    return jnp.transpose(x, (0, 3, 1, 2))


# ----------------------------------------------------------------------------
if __name__ == "__main__":
    # NetworkBlock(nb_layers=2, in_planes=4, out_planes=8, block=BasicBlock,
    #              stride=2, drop_rate=0.0)
    nb_layers, in_planes, out_planes, stride, drop_rate = 2, 4, 8, 2, 0.0

    root = jax.random.PRNGKey(0)
    kx, kp = jax.random.split(root)
    x = jax.random.normal(kx, (2, in_planes, 16, 16), jnp.float32)  # NCHW

    layer_params = []
    pkeys = jax.random.split(kp, nb_layers)
    for i in range(nb_layers):
        cin = in_planes if i == 0 else out_planes
        s = stride if i == 0 else 1
        layer_params.append(make_block_params(pkeys[i], cin, out_planes, s))

    fwd = jax.jit(network_block_forward, static_argnums=(2, 3))
    out = jax.block_until_ready(fwd(x, layer_params, stride, drop_rate))

    ref = jax.block_until_ready(network_block_ref(x, layer_params, stride))
    assert out.shape == ref.shape == (2, out_planes, 8, 8), out.shape
    # bf16 MXU inputs with f32 accumulation/epilogue -> ~1e-2-level tolerance.
    max_err = float(jnp.max(jnp.abs(out - ref)))
    assert jnp.allclose(out, ref, atol=5e-2, rtol=5e-2), max_err

    print("KERNEL_OK")
</pallas_src>

<mosaic_0001>
module attributes {stable_mosaic.version = 11 : i64} {
  func.func @kernel(%arg0: i32, %arg1: i32, %arg2: memref<64x128xbf16, #tpu.memory_space<vmem>>, %arg3: memref<128x128xbf16, #tpu.memory_space<vmem>>, %arg4: memref<1x128xf32, #tpu.memory_space<vmem>>, %arg5: memref<1x128xf32, #tpu.memory_space<vmem>>, %arg6: memref<1x128xf32, #tpu.memory_space<vmem>>, %arg7: memref<1x128xf32, #tpu.memory_space<vmem>>, %arg8: memref<64x128xbf16, #tpu.memory_space<vmem>>, %arg9: memref<64x128xf32, #tpu.memory_space<vmem>>) attributes {dimension_semantics = [#tpu.dimension_semantics<parallel>, #tpu.dimension_semantics<arbitrary>], iteration_bounds = array<i64: 2, 9>, scalar_prefetch = 0 : i64, scratch_operands = 1 : i64, tpu.core_type = #tpu.core_type<tc>, window_params = [{transform_indices = @transform_0, window_bounds = array<i64: 64, 128>}, {transform_indices = @transform_1, window_bounds = array<i64: 128, 128>}, {transform_indices = @transform_2, window_bounds = array<i64: 1, 128>}, {transform_indices = @transform_3, window_bounds = array<i64: 1, 128>}, {pipeline_mode = #tpu.pipeline_mode<synchronous>, transform_indices = @transform_4, window_bounds = array<i64: 1, 128>}, {pipeline_mode = #tpu.pipeline_mode<synchronous>, transform_indices = @transform_5, window_bounds = array<i64: 1, 128>}, {transform_indices = @transform_6, window_bounds = array<i64: 64, 128>}]} {
    %c0_i32 = arith.constant 0 : i32
    %0 = arith.cmpi eq, %arg1, %c0_i32 : i32
    %1 = arith.extui %0 : i1 to i32
    %c0_i32_0 = arith.constant 0 : i32
    %2 = arith.cmpi ne, %1, %c0_i32_0 : i32
    scf.if %2 {
      %cst_14 = arith.constant 0.000000e+00 : f32
      %22 = vector.broadcast %cst_14 : f32 to vector<64x128xf32>
      %c0_15 = arith.constant 0 : index
      %c0_16 = arith.constant 0 : index
      %23 = vector.load %arg9[%c0_15, %c0_16] : memref<64x128xf32, #tpu.memory_space<vmem>>, vector<64x128xf32>
      tpu.vector_store %arg9[%c0_15, %c0_16], %22 {strides = array<i32>} : memref<64x128xf32, #tpu.memory_space<vmem>>, vector<64x128xf32>,
    } else {
    }
    %c0 = arith.constant 0 : index
    %c0_1 = arith.constant 0 : index
    %3 = vector.load %arg2[%c0, %c0_1] : memref<64x128xbf16, #tpu.memory_space<vmem>>, vector<64x128xbf16>
    %4 = arith.extf %3 : vector<64x128xbf16> to vector<64x128xf32>
    %c0_2 = arith.constant 0 : index
    %c0_3 = arith.constant 0 : index
    %5 = vector.load %arg4[%c0_2, %c0_3] : memref<1x128xf32, #tpu.memory_space<vmem>>, vector<1x128xf32>
    %6 = vector.broadcast %5 : vector<1x128xf32> to vector<64x128xf32>
    %7 = arith.mulf %4, %6 : vector<64x128xf32>
    %c0_4 = arith.constant 0 : index
    %c0_5 = arith.constant 0 : index
    %8 = vector.load %arg5[%c0_4, %c0_5] : memref<1x128xf32, #tpu.memory_space<vmem>>, vector<1x128xf32>
    %9 = vector.broadcast %8 : vector<1x128xf32> to vector<64x128xf32>
    %10 = arith.addf %7, %9 : vector<64x128xf32>
    %cst = arith.constant 0.000000e+00 : f32
    %11 = vector.broadcast %cst : f32 to vector<64x128xf32>
    %12 = arith.maximumf %10, %11 : vector<64x128xf32>
    %13 = arith.truncf %12 : vector<64x128xf32> to vector<64x128xbf16>
    %c0_6 = arith.constant 0 : index
    %c0_7 = arith.constant 0 : index
    %14 = vector.load %arg9[%c0_6, %c0_7] : memref<64x128xf32, #tpu.memory_space<vmem>>, vector<64x128xf32>
    %c0_8 = arith.constant 0 : index
    %c0_9 = arith.constant 0 : index
    %15 = vector.load %arg3[%c0_8, %c0_9] : memref<128x128xbf16, #tpu.memory_space<vmem>>, vector<128x128xbf16>
    %cst_10 = arith.constant dense<0.000000e+00> : vector<64x128xf32>
    %16 = tpu.matmul %13, %15, %cst_10 {dimension_numbers = #tpu.dot_dimension_numbers<[1], [0], [0], [1], [0, 0, 1, 1], [], []>} : vector<64x128xbf16>, vector<128x128xbf16>, vector<64x128xf32> -> vector<64x128xf32>
    %17 = arith.addf %14, %16 : vector<64x128xf32>
    %c0_11 = arith.constant 0 : index
    %c0_12 = arith.constant 0 : index
    %18 = vector.load %arg9[%c0_11, %c0_12] : memref<64x128xf32, #tpu.memory_space<vmem>>, vector<64x128xf32>
    tpu.vector_store %arg9[%c0_11, %c0_12], %17 {strides = array<i32>} : memref<64x128xf32, #tpu.memory_space<vmem>>, vector<64x128xf32>,
    %c8_i32 = arith.constant 8 : i32
    %19 = arith.cmpi eq, %arg1, %c8_i32 : i32
    %20 = arith.extui %19 : i1 to i32
    %c0_i32_13 = arith.constant 0 : i32
    %21 = arith.cmpi ne, %20, %c0_i32_13 : i32
    scf.if %21 {
      %c0_14 = arith.constant 0 : index
      %c0_15 = arith.constant 0 : index
      %22 = vector.load %arg9[%c0_14, %c0_15] : memref<64x128xf32, #tpu.memory_space<vmem>>, vector<64x128xf32>
      %c0_16 = arith.constant 0 : index
      %c0_17 = arith.constant 0 : index
      %23 = vector.load %arg6[%c0_16, %c0_17] : memref<1x128xf32, #tpu.memory_space<vmem>>, vector<1x128xf32>
      %24 = vector.broadcast %23 : vector<1x128xf32> to vector<64x128xf32>
      %25 = arith.mulf %22, %24 : vector<64x128xf32>
      %c0_18 = arith.constant 0 : index
      %c0_19 = arith.constant 0 : index
      %26 = vector.load %arg7[%c0_18, %c0_19] : memref<1x128xf32, #tpu.memory_space<vmem>>, vector<1x128xf32>
      %27 = vector.broadcast %26 : vector<1x128xf32> to vector<64x128xf32>
      %28 = arith.addf %25, %27 : vector<64x128xf32>
      %cst_20 = arith.constant 0.000000e+00 : f32
      %29 = vector.broadcast %cst_20 : f32 to vector<64x128xf32>
      %30 = arith.maximumf %28, %29 : vector<64x128xf32>
      %31 = arith.truncf %30 : vector<64x128xf32> to vector<64x128xbf16>
      %c0_21 = arith.constant 0 : index
      %c0_22 = arith.constant 0 : index
      %32 = vector.load %arg8[%c0_21, %c0_22] : memref<64x128xbf16, #tpu.memory_space<vmem>>, vector<64x128xbf16>
      tpu.vector_store %arg8[%c0_21, %c0_22], %31 {strides = array<i32>} : memref<64x128xbf16, #tpu.memory_space<vmem>>, vector<64x128xbf16>,
    } else {
    }
    return
  }
  func.func @transform_0(%arg0: i32, %arg1: i32) -> (i32, i32) {
    %c0_i32 = arith.constant 0 : i32
    return %arg0, %arg1 : i32, i32
  }
  func.func @transform_1(%arg0: i32, %arg1: i32) -> (i32, i32) {
    %c0_i32 = arith.constant 0 : i32
    %c0_i32_0 = arith.constant 0 : i32
    return %arg1, %c0_i32 : i32, i32
  }
  func.func @transform_2(%arg0: i32, %arg1: i32) -> (i32, i32) {
    %c0_i32 = arith.constant 0 : i32
    %c0_i32_0 = arith.constant 0 : i32
    return %c0_i32, %arg1 : i32, i32
  }
  func.func @transform_3(%arg0: i32, %arg1: i32) -> (i32, i32) {
    %c0_i32 = arith.constant 0 : i32
    %c0_i32_0 = arith.constant 0 : i32
    return %c0_i32, %arg1 : i32, i32
  }
  func.func @transform_4(%arg0: i32, %arg1: i32) -> (i32, i32) {
    %c0_i32 = arith.constant 0 : i32
    %c0_i32_0 = arith.constant 0 : i32
    %c0_i32_1 = arith.constant 0 : i32
    return %c0_i32, %c0_i32_0 : i32, i32
  }
  func.func @transform_5(%arg0: i32, %arg1: i32) -> (i32, i32) {
    %c0_i32 = arith.constant 0 : i32
    %c0_i32_0 = arith.constant 0 : i32
    %c0_i32_1 = arith.constant 0 : i32
    return %c0_i32, %c0_i32_0 : i32, i32
  }
  func.func @transform_6(%arg0: i32, %arg1: i32) -> (i32, i32) {
    %c0_i32 = arith.constant 0 : i32
    %c0_i32_0 = arith.constant 0 : i32
    return %arg0, %c0_i32 : i32, i32
  }
}

module attributes {stable_mosaic.version = 11 : i64} {
  func.func @kernel(%arg0: i32, %arg1: i32, %arg2: memref<64x128xbf16, #tpu.memory_space<vmem>>, %arg3: memref<128x128xbf16, #tpu.memory_space<vmem>>, %arg4: memref<1x128xf32, #tpu.memory_space<vmem>>, %arg5: memref<1x128xf32, #tpu.memory_space<vmem>>, %arg6: memref<64x128xf32, #tpu.memory_space<vmem>>, %arg7: memref<64x128xf32, #tpu.memory_space<vmem>>) attributes {dimension_semantics = [#tpu.dimension_semantics<parallel>, #tpu.dimension_semantics<arbitrary>], iteration_bounds = array<i64: 2, 1>, scalar_prefetch = 0 : i64, scratch_operands = 1 : i64, tpu.core_type = #tpu.core_type<tc>, window_params = [{transform_indices = @transform_0, window_bounds = array<i64: 64, 128>}, {transform_indices = @transform_1, window_bounds = array<i64: 128, 128>}, {transform_indices = @transform_2, window_bounds = array<i64: 1, 128>}, {transform_indices = @transform_3, window_bounds = array<i64: 1, 128>}, {transform_indices = @transform_4, window_bounds = array<i64: 64, 128>}]} {
    %c0_i32 = arith.constant 0 : i32
    %0 = arith.cmpi eq, %arg1, %c0_i32 : i32
    %1 = arith.extui %0 : i1 to i32
    %c0_i32_0 = arith.constant 0 : i32
    %2 = arith.cmpi ne, %1, %c0_i32_0 : i32
    scf.if %2 {
      %cst_15 = arith.constant 0.000000e+00 : f32
      %22 = vector.broadcast %cst_15 : f32 to vector<64x128xf32>
      %c0_16 = arith.constant 0 : index
      %c0_17 = arith.constant 0 : index
      %23 = vector.load %arg7[%c0_16, %c0_17] : memref<64x128xf32, #tpu.memory_space<vmem>>, vector<64x128xf32>
      tpu.vector_store %arg7[%c0_16, %c0_17], %22 {strides = array<i32>} : memref<64x128xf32, #tpu.memory_space<vmem>>, vector<64x128xf32>,
    } else {
    }
    %c0 = arith.constant 0 : index
    %c0_1 = arith.constant 0 : index
    %3 = vector.load %arg2[%c0, %c0_1] : memref<64x128xbf16, #tpu.memory_space<vmem>>, vector<64x128xbf16>
    %4 = arith.extf %3 : vector<64x128xbf16> to vector<64x128xf32>
    %c0_2 = arith.constant 0 : index
    %c0_3 = arith.constant 0 : index
    %5 = vector.load %arg4[%c0_2, %c0_3] : memref<1x128xf32, #tpu.memory_space<vmem>>, vector<1x128xf32>
    %6 = vector.broadcast %5 : vector<1x128xf32> to vector<64x128xf32>
    %7 = arith.mulf %4, %6 : vector<64x128xf32>
    %c0_4 = arith.constant 0 : index
    %c0_5 = arith.constant 0 : index
    %8 = vector.load %arg5[%c0_4, %c0_5] : memref<1x128xf32, #tpu.memory_space<vmem>>, vector<1x128xf32>
    %9 = vector.broadcast %8 : vector<1x128xf32> to vector<64x128xf32>
    %10 = arith.addf %7, %9 : vector<64x128xf32>
    %cst = arith.constant 0.000000e+00 : f32
    %11 = vector.broadcast %cst : f32 to vector<64x128xf32>
    %12 = arith.maximumf %10, %11 : vector<64x128xf32>
    %13 = arith.truncf %12 : vector<64x128xf32> to vector<64x128xbf16>
    %c0_6 = arith.constant 0 : index
    %c0_7 = arith.constant 0 : index
    %14 = vector.load %arg7[%c0_6, %c0_7] : memref<64x128xf32, #tpu.memory_space<vmem>>, vector<64x128xf32>
    %c0_8 = arith.constant 0 : index
    %c0_9 = arith.constant 0 : index
    %15 = vector.load %arg3[%c0_8, %c0_9] : memref<128x128xbf16, #tpu.memory_space<vmem>>, vector<128x128xbf16>
    %cst_10 = arith.constant dense<0.000000e+00> : vector<64x128xf32>
    %16 = tpu.matmul %13, %15, %cst_10 {dimension_numbers = #tpu.dot_dimension_numbers<[1], [0], [0], [1], [0, 0, 1, 1], [], []>} : vector<64x128xbf16>, vector<128x128xbf16>, vector<64x128xf32> -> vector<64x128xf32>
    %17 = arith.addf %14, %16 : vector<64x128xf32>
    %c0_11 = arith.constant 0 : index
    %c0_12 = arith.constant 0 : index
    %18 = vector.load %arg7[%c0_11, %c0_12] : memref<64x128xf32, #tpu.memory_space<vmem>>, vector<64x128xf32>
    tpu.vector_store %arg7[%c0_11, %c0_12], %17 {strides = array<i32>} : memref<64x128xf32, #tpu.memory_space<vmem>>, vector<64x128xf32>,
    %c0_i32_13 = arith.constant 0 : i32
    %19 = arith.cmpi eq, %arg1, %c0_i32_13 : i32
    %20 = arith.extui %19 : i1 to i32
    %c0_i32_14 = arith.constant 0 : i32
    %21 = arith.cmpi ne, %20, %c0_i32_14 : i32
    scf.if %21 {
      %c0_15 = arith.constant 0 : index
      %c0_16 = arith.constant 0 : index
      %22 = vector.load %arg7[%c0_15, %c0_16] : memref<64x128xf32, #tpu.memory_space<vmem>>, vector<64x128xf32>
      %c0_17 = arith.constant 0 : index
      %c0_18 = arith.constant 0 : index
      %23 = vector.load %arg6[%c0_17, %c0_18] : memref<64x128xf32, #tpu.memory_space<vmem>>, vector<64x128xf32>
      tpu.vector_store %arg6[%c0_17, %c0_18], %22 {strides = array<i32>} : memref<64x128xf32, #tpu.memory_space<vmem>>, vector<64x128xf32>,
    } else {
    }
    return
  }
  func.func @transform_0(%arg0: i32, %arg1: i32) -> (i32, i32) {
    %c0_i32 = arith.constant 0 : i32
    return %arg0, %arg1 : i32, i32
  }
  func.func @transform_1(%arg0: i32, %arg1: i32) -> (i32, i32) {
    %c0_i32 = arith.constant 0 : i32
    %c0_i32_0 = arith.constant 0 : i32
    return %arg1, %c0_i32 : i32, i32
  }
  func.func @transform_2(%arg0: i32, %arg1: i32) -> (i32, i32) {
    %c0_i32 = arith.constant 0 : i32
    %c0_i32_0 = arith.constant 0 : i32
    return %c0_i32, %arg1 : i32, i32
  }
  func.func @transform_3(%arg0: i32, %arg1: i32) -> (i32, i32) {
    %c0_i32 = arith.constant 0 : i32
    %c0_i32_0 = arith.constant 0 : i32
    return %c0_i32, %arg1 : i32, i32
  }
  func.func @transform_4(%arg0: i32, %arg1: i32) -> (i32, i32) {
    %c0_i32 = arith.constant 0 : i32
    %c0_i32_0 = arith.constant 0 : i32
    return %arg0, %c0_i32 : i32, i32
  }
}

module attributes {stable_mosaic.version = 11 : i64} {
  func.func @kernel(%arg0: i32, %arg1: i32, %arg2: memref<64x128xbf16, #tpu.memory_space<vmem>>, %arg3: memref<128x128xbf16, #tpu.memory_space<vmem>>, %arg4: memref<64x128xf32, #tpu.memory_space<vmem>>, %arg5: memref<64x128xf32, #tpu.memory_space<vmem>>, %arg6: memref<64x128xf32, #tpu.memory_space<vmem>>) attributes {dimension_semantics = [#tpu.dimension_semantics<parallel>, #tpu.dimension_semantics<arbitrary>], iteration_bounds = array<i64: 2, 9>, scalar_prefetch = 0 : i64, scratch_operands = 1 : i64, tpu.core_type = #tpu.core_type<tc>, window_params = [{transform_indices = @transform_0, window_bounds = array<i64: 64, 128>}, {transform_indices = @transform_1, window_bounds = array<i64: 128, 128>}, {transform_indices = @transform_2, window_bounds = array<i64: 64, 128>}, {transform_indices = @transform_3, window_bounds = array<i64: 64, 128>}]} {
    %c0_i32 = arith.constant 0 : i32
    %0 = arith.cmpi eq, %arg1, %c0_i32 : i32
    %1 = arith.extui %0 : i1 to i32
    %c0_i32_0 = arith.constant 0 : i32
    %2 = arith.cmpi ne, %1, %c0_i32_0 : i32
    scf.if %2 {
      %cst_9 = arith.constant 0.000000e+00 : f32
      %12 = vector.broadcast %cst_9 : f32 to vector<64x128xf32>
      %c0_10 = arith.constant 0 : index
      %c0_11 = arith.constant 0 : index
      %13 = vector.load %arg6[%c0_10, %c0_11] : memref<64x128xf32, #tpu.memory_space<vmem>>, vector<64x128xf32>
      tpu.vector_store %arg6[%c0_10, %c0_11], %12 {strides = array<i32>} : memref<64x128xf32, #tpu.memory_space<vmem>>, vector<64x128xf32>,
    } else {
    }
    %c0 = arith.constant 0 : index
    %c0_1 = arith.constant 0 : index
    %3 = vector.load %arg2[%c0, %c0_1] : memref<64x128xbf16, #tpu.memory_space<vmem>>, vector<64x128xbf16>
    %c0_2 = arith.constant 0 : index
    %c0_3 = arith.constant 0 : index
    %4 = vector.load %arg6[%c0_2, %c0_3] : memref<64x128xf32, #tpu.memory_space<vmem>>, vector<64x128xf32>
    %c0_4 = arith.constant 0 : index
    %c0_5 = arith.constant 0 : index
    %5 = vector.load %arg3[%c0_4, %c0_5] : memref<128x128xbf16, #tpu.memory_space<vmem>>, vector<128x128xbf16>
    %cst = arith.constant dense<0.000000e+00> : vector<64x128xf32>
    %6 = tpu.matmul %3, %5, %cst {dimension_numbers = #tpu.dot_dimension_numbers<[1], [0], [0], [1], [0, 0, 1, 1], [], []>} : vector<64x128xbf16>, vector<128x128xbf16>, vector<64x128xf32> -> vector<64x128xf32>
    %7 = arith.addf %4, %6 : vector<64x128xf32>
    %c0_6 = arith.constant 0 : index
    %c0_7 = arith.constant 0 : index
    %8 = vector.load %arg6[%c0_6, %c0_7] : memref<64x128xf32, #tpu.memory_space<vmem>>, vector<64x128xf32>
    tpu.vector_store %arg6[%c0_6, %c0_7], %7 {strides = array<i32>} : memref<64x128xf32, #tpu.memory_space<vmem>>, vector<64x128xf32>,
    %c8_i32 = arith.constant 8 : i32
    %9 = arith.cmpi eq, %arg1, %c8_i32 : i32
    %10 = arith.extui %9 : i1 to i32
    %c0_i32_8 = arith.constant 0 : i32
    %11 = arith.cmpi ne, %10, %c0_i32_8 : i32
    scf.if %11 {
      %c0_9 = arith.constant 0 : index
      %c0_10 = arith.constant 0 : index
      %12 = vector.load %arg6[%c0_9, %c0_10] : memref<64x128xf32, #tpu.memory_space<vmem>>, vector<64x128xf32>
      %c0_11 = arith.constant 0 : index
      %c0_12 = arith.constant 0 : index
      %13 = vector.load %arg4[%c0_11, %c0_12] : memref<64x128xf32, #tpu.memory_space<vmem>>, vector<64x128xf32>
      %14 = arith.addf %12, %13 : vector<64x128xf32>
      %c0_13 = arith.constant 0 : index
      %c0_14 = arith.constant 0 : index
      %15 = vector.load %arg5[%c0_13, %c0_14] : memref<64x128xf32, #tpu.memory_space<vmem>>, vector<64x128xf32>
      tpu.vector_store %arg5[%c0_13, %c0_14], %14 {strides = array<i32>} : memref<64x128xf32, #tpu.memory_space<vmem>>, vector<64x128xf32>,
    } else {
    }
    return
  }
  func.func @transform_0(%arg0: i32, %arg1: i32) -> (i32, i32) {
    %c0_i32 = arith.constant 0 : i32
    return %arg0, %arg1 : i32, i32
  }
  func.func @transform_1(%arg0: i32, %arg1: i32) -> (i32, i32) {
    %c0_i32 = arith.constant 0 : i32
    %c0_i32_0 = arith.constant 0 : i32
    return %arg1, %c0_i32 : i32, i32
  }
  func.func @transform_2(%arg0: i32, %arg1: i32) -> (i32, i32) {
    %c0_i32 = arith.constant 0 : i32
    %c0_i32_0 = arith.constant 0 : i32
    return %arg0, %c0_i32 : i32, i32
  }
  func.func @transform_3(%arg0: i32, %arg1: i32) -> (i32, i32) {
    %c0_i32 = arith.constant 0 : i32
    %c0_i32_0 = arith.constant 0 : i32
    return %arg0, %c0_i32 : i32, i32
  }
}

</mosaic_0001>

<llo_original>
// kernel: network_block_forward.5
$region0: #{network_block_forward.5}
  #allocation0 [shape = 'u32[]', space=smem, size = 0x4, offset = 0x4, fixed_abs, tag = 'smem constant byte address 0x4 - core index']
  #allocation1 [shape = 'u32[144,128]{1,0:T(1,128)}', space=vmem, size = 0x12000, scoped, tag = 'internal scratch']
  #allocation2 [shape = 'f32[64,128]{1,0:T(8,128)}', space=vmem, size = 0x8000, scoped, tag = 'scratch operand']
  %s0 = inlined_call_operand.vmem [shape: bf16[128,1152], index: 0, kind: input, shape index: {}]
  %s1 = inlined_call_operand.vmem [shape: bf16[1152,128], index: 1, kind: input, shape index: {}]
  %s2 = inlined_call_operand.vmem [shape: f32[1,1152], index: 2, kind: input, shape index: {}]
  %s3 = inlined_call_operand.vmem [shape: f32[1,1152], index: 3, kind: input, shape index: {}]
  %s4 = inlined_call_operand.vmem [shape: f32[1,128], index: 4, kind: input, shape index: {}]
  %s5 = inlined_call_operand.vmem [shape: f32[1,128], index: 5, kind: input, shape index: {}]
  %s6 = inlined_call_operand.vmem [shape: bf16[128,128], index: 6, kind: output, shape index: {}]
  %s7 = sld [smem:[#allocation0]]
  $region106: #{network_block_forward.5} parent=0
    _
  %s9 = ssub.s32 1, %s7
  %s10 = scalar_select 0, %s9, %s7
  $region1: #{network_block_forward.5} parent=0
    #allocation3 [shape = 'u8[32768]{0}', space=vmem, size = 0x8000, scoped, tag = 'input window, operand 0']
    loop: start=0, step=1, limit=20
    $region2: #{network_block_forward.5} parent=1 // loop_pre_header
      _
    $region3: #{network_block_forward.5} parent=1 // loop_header
      %s12 = sphi 0, %s16
      %p13 = scmp.ge.s32.totalorder %s12, 20
      %s19 = sphi 0, %s31
      %s20 = sphi 0, %s27
      %s21 = sphi 0, %s19
      %s22 = sphi 0, %s20
      %s23 = sphi 0, %s21
      %s24 = sphi 0, %s22
      %s36 = sphi 0, %s38
      %s39 = sphi 0, %s36
      %s40 = sphi 0, %s39
      %s56 = sphi 0, %s40
      %s62 = sphi 0, %s64
      %s65 = sphi 0, %s62
      %s66 = sphi 0, %s65
      %s82 = sphi 0, %s66
      %s88 = sphi 0, %s90
      %s91 = sphi 0, %s88
      %s92 = sphi 0, %s91
      %s108 = sphi 0, %s92
      %s114 = sphi 0, %s116
      %s117 = sphi 0, %s114
      %s118 = sphi 0, %s117
      %s134 = sphi 0, %s118
      %s138 = sphi 0, %s138
      %s140 = sphi 0, %s138
      %s141 = sphi 0, %s140
      %s155 = sphi 0, %s141
      %s159 = sphi 0, %s159
      %s161 = sphi 0, %s159
      %s162 = sphi 0, %s161
      %s176 = sphi 0, %s162
      %s182 = sphi 0, %s184
      %s185 = sphi 0, %s182
      %s186 = sphi 0, %s185
      %s202 = sphi 0, %s186
    $region4: #{network_block_forward.5} parent=1 // loop_header_branch
      %15 = sbr.rel (%p13) target = $region8
    $region5: #{network_block_forward.5} parent=1 // loop_body
      %s17 = ssub.s32 %s12, 1
      %s18 = ssub.s32 %s12, 2
      %s25 = sadd.s32 1, %s20
      %p26 = scmp.ge.s32.totalorder %s25, 9
      %s27 = scalar_select %p26, 0, %s25
      %s28 = sadd.s32 1, %s19
      %s29 = scalar_select %p26, %s28, %s19
      %p30 = scmp.ge.s32.totalorder %s29, 2
      %s31 = scalar_select %p30, 0, %s29
      %s32 = ssub.s32 %s19, %s31
      %s33 = ssub.s32 %s20, %s27
      %s34 = sor.u32 %s32, %s33
      %p35 = scmp.eq.s32.totalorder %s34, 0
      %s37 = sadd.s32 %s36, 1
      %s38 = scalar_select %p35, %s36, %s37
      %p41 = pneg %p35
      %p42 = scmp.eq.s32.totalorder %s12, 17
      %p43 = por %p41, %p42
      %p44 = scmp.ne.s32.totalorder %s36, %s39
      %p45 = scmp.eq.s32.totalorder %s12, 0
      %p46 = por %p44, %p45
      %p47 = scmp.ne.s32.totalorder %s36, %s39
      %p48 = scmp.eq.s32.totalorder %s17, 17
      %p49 = por %p47, %p48
      %p50 = scmp.ne.s32.totalorder %s39, %s40
      %p51 = scmp.eq.s32.totalorder %s17, 0
      %p52 = por %p50, %p51
      %p53 = scmp.ne.s32.totalorder %s39, %s40
      %p54 = scmp.eq.s32.totalorder %s18, 17
      %p55 = por %p53, %p54
      %p57 = scmp.ne.s32.totalorder %s40, %s56
      %p58 = scmp.eq.s32.totalorder %s18, 0
      %p59 = por %p57, %p58
      %s60 = ssub.s32 %s20, %s27
      %p61 = scmp.eq.s32.totalorder %s60, 0
      %s63 = sadd.s32 %s62, 1
      %s64 = scalar_select %p61, %s62, %s63
      %p67 = pneg %p61
      %p68 = scmp.eq.s32.totalorder %s12, 17
      %p69 = por %p67, %p68
      %p70 = scmp.ne.s32.totalorder %s62, %s65
      %p71 = scmp.eq.s32.totalorder %s12, 0
      %p72 = por %p70, %p71
      %p73 = scmp.ne.s32.totalorder %s62, %s65
      %p74 = scmp.eq.s32.totalorder %s17, 17
      %p75 = por %p73, %p74
      %p76 = scmp.ne.s32.totalorder %s65, %s66
      %p77 = scmp.eq.s32.totalorder %s17, 0
      %p78 = por %p76, %p77
      %p79 = scmp.ne.s32.totalorder %s65, %s66
      %p80 = scmp.eq.s32.totalorder %s18, 17
      %p81 = por %p79, %p80
      %p83 = scmp.ne.s32.totalorder %s66, %s82
      %p84 = scmp.eq.s32.totalorder %s18, 0
      %p85 = por %p83, %p84
      %s86 = ssub.s32 %s20, %s27
      %p87 = scmp.eq.s32.totalorder %s86, 0
      %s89 = sadd.s32 %s88, 1
      %s90 = scalar_select %p87, %s88, %s89
      %p93 = pneg %p87
      %p94 = scmp.eq.s32.totalorder %s12, 17
      %p95 = por %p93, %p94
      %p96 = scmp.ne.s32.totalorder %s88, %s91
      %p97 = scmp.eq.s32.totalorder %s12, 0
      %p98 = por %p96, %p97
      %p99 = scmp.ne.s32.totalorder %s88, %s91
      %p100 = scmp.eq.s32.totalorder %s17, 17
      %p101 = por %p99, %p100
      %p102 = scmp.ne.s32.totalorder %s91, %s92
      %p103 = scmp.eq.s32.totalorder %s17, 0
      %p104 = por %p102, %p103
      %p105 = scmp.ne.s32.totalorder %s91, %s92
      %p106 = scmp.eq.s32.totalorder %s18, 17
      %p107 = por %p105, %p106
      %p109 = scmp.ne.s32.totalorder %s92, %s108
      %p110 = scmp.eq.s32.totalorder %s18, 0
      %p111 = por %p109, %p110
      %s112 = ssub.s32 %s20, %s27
      %p113 = scmp.eq.s32.totalorder %s112, 0
      %s115 = sadd.s32 %s114, 1
      %s116 = scalar_select %p113, %s114, %s115
      %p119 = pneg %p113
      %p120 = scmp.eq.s32.totalorder %s12, 17
      %p121 = por %p119, %p120
      %p122 = scmp.ne.s32.totalorder %s114, %s117
      %p123 = scmp.eq.s32.totalorder %s12, 0
      %p124 = por %p122, %p123
      %p125 = scmp.ne.s32.totalorder %s114, %s117
      %p126 = scmp.eq.s32.totalorder %s17, 17
      %p127 = por %p125, %p126
      %p128 = scmp.ne.s32.totalorder %s117, %s118
      %p129 = scmp.eq.s32.totalorder %s17, 0
      %p130 = por %p128, %p129
      %p131 = scmp.ne.s32.totalorder %s117, %s118
      %p132 = scmp.eq.s32.totalorder %s18, 17
      %p133 = por %p131, %p132
      %p135 = scmp.ne.s32.totalorder %s118, %s134
      %p136 = scmp.eq.s32.totalorder %s18, 0
      %p137 = por %p135, %p136
      %s139 = sadd.s32 %s138, 1
      %p142 = scmp.eq.s32.totalorder %s12, 17
      %p143 = scmp.ne.s32.totalorder %s138, %s140
      %p144 = scmp.eq.s32.totalorder %s12, 0
      %p145 = por %p143, %p144
      %p146 = scmp.ne.s32.totalorder %s138, %s140
      %p147 = scmp.eq.s32.totalorder %s17, 17
      %p148 = por %p146, %p147
      %p149 = scmp.ne.s32.totalorder %s140, %s141
      %p150 = scmp.eq.s32.totalorder %s17, 0
      %p151 = por %p149, %p150
      %p152 = scmp.ne.s32.totalorder %s140, %s141
      %p153 = scmp.eq.s32.totalorder %s18, 17
      %p154 = por %p152, %p153
      %p156 = scmp.ne.s32.totalorder %s141, %s155
      %p157 = scmp.eq.s32.totalorder %s18, 0
      %p158 = por %p156, %p157
      %s160 = sadd.s32 %s159, 1
      %p163 = scmp.eq.s32.totalorder %s12, 17
      %p164 = scmp.ne.s32.totalorder %s159, %s161
      %p165 = scmp.eq.s32.totalorder %s12, 0
      %p166 = por %p164, %p165
      %p167 = scmp.ne.s32.totalorder %s159, %s161
      %p168 = scmp.eq.s32.totalorder %s17, 17
      %p169 = por %p167, %p168
      %p170 = scmp.ne.s32.totalorder %s161, %s162
      %p171 = scmp.eq.s32.totalorder %s17, 0
      %p172 = por %p170, %p171
      %p173 = scmp.ne.s32.totalorder %s161, %s162
      %p174 = scmp.eq.s32.totalorder %s18, 17
      %p175 = por %p173, %p174
      %p177 = scmp.ne.s32.totalorder %s162, %s176
      %p178 = scmp.eq.s32.totalorder %s18, 0
      %p179 = por %p177, %p178
      %s180 = ssub.s32 %s19, %s31
      %p181 = scmp.eq.s32.totalorder %s180, 0
      %s183 = sadd.s32 %s182, 1
      %s184 = scalar_select %p181, %s182, %s183
      %p187 = pneg %p181
      %p188 = scmp.eq.s32.totalorder %s12, 17
      %p189 = por %p187, %p188
      %p190 = scmp.ne.s32.totalorder %s182, %s185
      %p191 = scmp.eq.s32.totalorder %s12, 0
      %p192 = por %p190, %p191
      %p193 = scmp.ne.s32.totalorder %s182, %s185
      %p194 = scmp.eq.s32.totalorder %s17, 17
      %p195 = por %p193, %p194
      %p196 = scmp.ne.s32.totalorder %s185, %s186
      %p197 = scmp.eq.s32.totalorder %s17, 0
      %p198 = por %p196, %p197
      %p199 = scmp.ne.s32.totalorder %s185, %s186
      %p200 = scmp.eq.s32.totalorder %s18, 17
      %p201 = por %p199, %p200
      %p203 = scmp.ne.s32.totalorder %s186, %s202
      %p204 = scmp.eq.s32.totalorder %s18, 0
      %p205 = por %p203, %p204
      %p206 = scmp.le.s32.totalorder 1, %s12
      %p207 = scmp.lt.s32.totalorder %s12, 19
      %p208 = pnand %p206, %p207
      %p209 = pneg %p208
      // Predicated region
      $region9: #{network_block_forward.5} parent=5 // pred_check
        _
      $region10: #{network_block_forward.5} parent=5 // pred_check_branch
        %211 = sbr.rel (%p208) target = $region12
      $region11: #{network_block_forward.5} parent=5 // pred_region
        %s212 = ssub.s32 %s12, 1
        // Predicated region
        $region13: #{network_block_forward.5} parent=11 // pred_check
          %p213 = pneg %p151
        $region14: #{network_block_forward.5} parent=11 // pred_check_branch
          %215 = sbr.rel (%p213) target = $region16
        $region15: #{network_block_forward.5} parent=11 // pred_region
          _
        $region16: #{network_block_forward.5} parent=11 // pred_fallthru
          _
        // Predicated region
        $region17: #{network_block_forward.5} parent=11 // pred_check
          %p216 = pneg %p172
        $region18: #{network_block_forward.5} parent=11 // pred_check_branch
          %218 = sbr.rel (%p216) target = $region20
        $region19: #{network_block_forward.5} parent=11 // pred_region
          _
        $region20: #{network_block_forward.5} parent=11 // pred_fallthru
          _
      $region12: #{network_block_forward.5} parent=5 // pred_fallthru
        _
      %p219 = scmp.lt.s32.totalorder %s12, 18
      // Predicated region
      $region21: #{network_block_forward.5} parent=5 // pred_check
        %p220 = pneg %p219
      $region22: #{network_block_forward.5} parent=5 // pred_check_branch
        %222 = sbr.rel (%p220) target = $region24
      $region23: #{network_block_forward.5} parent=5 // pred_region
        // Predicated region
        $region25: #{network_block_forward.5} parent=23 // pred_check
          %p223 = pneg %p46
        $region26: #{network_block_forward.5} parent=23 // pred_check_branch
          %225 = sbr.rel (%p223) target = $region28
        $region27: #{network_block_forward.5} parent=23 // pred_region
          %s226 = sand.u32 %s36, 1
          %s227 = sand.u32 %s36, 1
          %s228 = smul.addr %s227, 32
          %s229 = scalar_lea.vmem [#allocation3], %s228
          %s230 = smul.u32 8, %s19
          %s231 = smul.addr %s230, 9
          %s232 = sadd.s32 %s20, %s231
          %s233 = smul.addr %s232, 4
          %s234 = scalar_lea.vmem %s0, %s233
          // Predicated region
          $region29: #{network_block_forward.5} parent=27 // pred_check
            _
          $region30: #{network_block_forward.5} parent=27 // pred_check_branch
            %236 = sbr.rel (0) target = $region32
          $region31: #{network_block_forward.5} parent=27 // pred_region
            // Predicated region
            $region33: #{network_block_forward.5} parent=31 // pred_check
              _
            $region34: #{network_block_forward.5} parent=31 // pred_check_branch
              %238 = sbr.rel target = $region36
            $region35: #{network_block_forward.5} parent=31 // pred_region
              // Predicated region
              $region48: #{network_block_forward.5} parent=35 // pred_check
                _
              $region49: #{network_block_forward.5} parent=35 // pred_check_branch
                %267 = sbr.rel (0) target = $region51
              $region50: #{network_block_forward.5} parent=35 // pred_region
                loop: start=0, step=1, limit=1
                $region52: #{network_block_forward.5} parent=50 // loop_pre_header
                  _
                $region53: #{network_block_forward.5} parent=50 // loop_header
                  %s269 = sphi 0, %s273
                  %p270 = scmp.ge.s32.totalorder %s269, 1
                  %s274 = sphi %s234, %s234
                  %s275 = sphi %s229, %s229
                $region54: #{network_block_forward.5} parent=50 // loop_header_branch
                  %272 = sbr.rel (%p270) target = $region58
                $region55: #{network_block_forward.5} parent=50 // loop_body
                  _
                $region56: #{network_block_forward.5} parent=50 // loop_footer
                  %s273 = sadd.s32 1, %s269
                $region57: #{network_block_forward.5} parent=50 // loop_footer_branch
                  %268 = sbr.rel target = $region53
                $region58: #{network_block_forward.5} parent=50 // loop_exit
                  _
                loop: start=0, step=1, limit=1
                $region59: #{network_block_forward.5} parent=50 // loop_pre_header
                  _
                $region60: #{network_block_forward.5} parent=50 // loop_header
                  %s278 = sphi 0, %s282
                  %p279 = scmp.ge.s32.totalorder %s278, 1
                  %s283 = sphi %s234, %s234
                  %s284 = sphi %s229, %s229
                $region61: #{network_block_forward.5} parent=50 // loop_header_branch
                  %281 = sbr.rel (%p279) target = $region65
                $region62: #{network_block_forward.5} parent=50 // loop_body
                  %v285 = vld [vmem:[%s283] sm:$0xf]
                  %286 = vst [vmem:[%s284] sm:$0xf] %v285
                  %v287 = vld [vmem:[%s283 + $0x24] sm:$0xf]
                  %288 = vst [vmem:[%s284 + $0x4] sm:$0xf] %v287
                  %v289 = vld [vmem:[%s283 + $0x48] sm:$0xf]
                  %290 = vst [vmem:[%s284 + $0x8] sm:$0xf] %v289
                  %v291 = vld [vmem:[%s283 + $0x6c] sm:$0xf]
                  %292 = vst [vmem:[%s284 + $0xc] sm:$0xf] %v291
                  %v293 = vld [vmem:[%s283 + $0x90] sm:$0xf]
                  %294 = vst [vmem:[%s284 + $0x10] sm:$0xf] %v293
                  %v295 = vld [vmem:[%s283 + $0xb4] sm:$0xf]
                  %296 = vst [vmem:[%s284 + $0x14] sm:$0xf] %v295
                  %v297 = vld [vmem:[%s283 + $0xd8] sm:$0xf]
                  %298 = vst [vmem:[%s284 + $0x18] sm:$0xf] %v297
                  %v299 = vld [vmem:[%s283 + $0xfc] sm:$0xf]
                  %300 = vst [vmem:[%s284 + $0x1c] sm:$0xf] %v299
                $region63: #{network_block_forward.5} parent=50 // loop_footer
                  %s282 = sadd.s32 1, %s278
                $region64: #{network_block_forward.5} parent=50 // loop_footer_branch
                  %277 = sbr.rel target = $region60
                $region65: #{network_block_forward.5} parent=50 // loop_exit
                  _
              $region51: #{network_block_forward.5} parent=35 // pred_fallthru
                _
            $region36: #{network_block_forward.5} parent=31 // pred_fallthru
              _
            // Predicated region
            $region37: #{network_block_forward.5} parent=31 // pred_check
              _
            $region38: #{network_block_forward.5} parent=31 // pred_check_branch
              %240 = sbr.rel (0) target = $region40
            $region39: #{network_block_forward.5} parent=31 // pred_region
              loop: start=0, step=1, limit=1
              $region41: #{network_block_forward.5} parent=39 // loop_pre_header
                _
              $region42: #{network_block_forward.5} parent=39 // loop_header
                %s243 = sphi 0, %s247
                %p244 = scmp.ge.s32.totalorder %s243, 1
                %s248 = sphi %s234, %s234
                %s249 = sphi %s229, %s229
              $region43: #{network_block_forward.5} parent=39 // loop_header_branch
                %246 = sbr.rel (%p244) target = $region47
              $region44: #{network_block_forward.5} parent=39 // loop_body
                %v250 = vld [vmem:[%s248] sm:$0xf]
                %251 = vst [vmem:[%s249] sm:$0xf] %v250
                %v252 = vld [vmem:[%s248 + $0x24] sm:$0xf]
                %253 = vst [vmem:[%s249 + $0x4] sm:$0xf] %v252
                %v254 = vld [vmem:[%s248 + $0x48] sm:$0xf]
                %255 = vst [vmem:[%s249 + $0x8] sm:$0xf] %v254
                %v256 = vld [vmem:[%s248 + $0x6c] sm:$0xf]
                %257 = vst [vmem:[%s249 + $0xc] sm:$0xf] %v256
                %v258 = vld [vmem:[%s248 + $0x90] sm:$0xf]
                %259 = vst [vmem:[%s249 + $0x10] sm:$0xf] %v258
                %v260 = vld [vmem:[%s248 + $0xb4] sm:$0xf]
                %261 = vst [vmem:[%s249 + $0x14] sm:$0xf] %v260
                %v262 = vld [vmem:[%s248 + $0xd8] sm:$0xf]
                %263 = vst [vmem:[%s249 + $0x18] sm:$0xf] %v262
                %v264 = vld [vmem:[%s248 + $0xfc] sm:$0xf]
                %265 = vst [vmem:[%s249 + $0x1c] sm:$0xf] %v264
              $region45: #{network_block_forward.5} parent=39 // loop_footer
                %s247 = sadd.s32 1, %s243
              $region46: #{network_block_forward.5} parent=39 // loop_footer_branch
                %242 = sbr.rel target = $region42
              $region47: #{network_block_forward.5} parent=39 // loop_exit
                _
            $region40: #{network_block_forward.5} parent=31 // pred_fallthru
              _
          $region32: #{network_block_forward.5} parent=27 // pred_fallthru
            _
          %301 = vnop
        $region28: #{network_block_forward.5} parent=23 // pred_fallthru
          _
        // Predicated region
        $region66: #{network_block_forward.5} parent=23 // pred_check
          %p302 = pneg %p72
        $region67: #{network_block_forward.5} parent=23 // pred_check_branch
          %304 = sbr.rel (%p302) target = $region69
        $region68: #{network_block_forward.5} parent=23 // pred_region
          %s305 = smul.u32 16, %s20
          %p306 = scmp.lt.s32.totalorder %s305, 143
          %s307 = scalar_select %p306, %s305, 143
          %s308 = smul.addr %s307, 4
          %s309 = scalar_lea.vmem %s1, %s308
          %s310 = smul.u32 16, %s20
        $region69: #{network_block_forward.5} parent=23 // pred_fallthru
          _
        // Predicated region
        $region70: #{network_block_forward.5} parent=23 // pred_check
          %p311 = pneg %p98
        $region71: #{network_block_forward.5} parent=23 // pred_check_branch
          %313 = sbr.rel (%p311) target = $region73
        $region72: #{network_block_forward.5} parent=23 // pred_region
          %p314 = scmp.lt.s32.totalorder %s20, 8
          %s315 = scalar_select %p314, %s20, 8
          %s316 = scalar_lea.vmem %s2, %s315
        $region73: #{network_block_forward.5} parent=23 // pred_fallthru
          _
        // Predicated region
        $region74: #{network_block_forward.5} parent=23 // pred_check
          %p317 = pneg %p124
        $region75: #{network_block_forward.5} parent=23 // pred_check_branch
          %319 = sbr.rel (%p317) target = $region77
        $region76: #{network_block_forward.5} parent=23 // pred_region
          %p320 = scmp.lt.s32.totalorder %s20, 8
          %s321 = scalar_select %p320, %s20, 8
          %s322 = scalar_lea.vmem %s3, %s321
        $region77: #{network_block_forward.5} parent=23 // pred_fallthru
          _
      $region24: #{network_block_forward.5} parent=5 // pred_fallthru
        _
      %p323 = scmp.le.s32.totalorder 1, %s12
      %p324 = scmp.lt.s32.totalorder %s12, 19
      %p325 = pnand %p323, %p324
      %p326 = pneg %p325
      // Predicated region
      $region78: #{network_block_forward.5} parent=5 // pred_check
        _
      $region79: #{network_block_forward.5} parent=5 // pred_check_branch
        %328 = sbr.rel (%p325) target = $region81
      $region80: #{network_block_forward.5} parent=5 // pred_region
        %s329 = ssub.s32 %s12, 1
        %s330 = sand.u32 %s39, 1
        %s331 = sand.u32 %s39, 1
        %s332 = smul.addr %s331, 32
        %s333 = scalar_lea.vmem [#allocation3], %s332
        // Predicated region
        $region82: #{network_block_forward.5} parent=80 // pred_check
          %p334 = pneg %p52
        $region83: #{network_block_forward.5} parent=80 // pred_check_branch
          %336 = sbr.rel (%p334) target = $region85
        $region84: #{network_block_forward.5} parent=80 // pred_region
          _
        $region85: #{network_block_forward.5} parent=80 // pred_fallthru
          _
        %s337 = sand.u32 %s39, 1
        %s338 = sand.u32 %s39, 1
        %s339 = smul.addr %s338, 32
        %s340 = scalar_lea.vmem [#allocation3], %s339
        %p341 = pneg %p52
        %p342 = pneg %p49
        %s343 = smul.u32 16, %s22
        %p344 = scmp.lt.s32.totalorder %s343, 143
        %s345 = scalar_select %p344, %s343, 143
        %s346 = smul.addr %s345, 4
        %s347 = scalar_lea.vmem %s1, %s346
        %p348 = pneg %p78
        %p349 = pneg %p75
        %p350 = scmp.lt.s32.totalorder %s22, 8
        %s351 = scalar_select %p350, %s22, 8
        %s352 = scalar_lea.vmem %s2, %s351
        %p353 = pneg %p104
        %p354 = pneg %p101
        %p355 = scmp.lt.s32.totalorder %s22, 8
        %s356 = scalar_select %p355, %s22, 8
        %s357 = scalar_lea.vmem %s3, %s356
        %p358 = pneg %p130
        %p359 = pneg %p127
        %p360 = pneg %p151
        %p361 = pneg %p148
        %p362 = pneg %p172
        %p363 = pneg %p169
        %p364 = pneg %p198
        %p365 = pneg %p195
        %s366 = smul.u32 8, %s21
        %p367 = scmp.lt.s32.totalorder %s366, 15
        %s368 = scalar_select %p367, %s366, 15
        %s369 = smul.addr %s368, 4
        %s370 = scalar_lea.vmem %s6, %s369
        %s371 = smul.u32 8, %s21
        %s372 = smul.u32 16, %s22
        %p373 = scmp.lt.s32.totalorder %s372, 143
        %s374 = scalar_select %p373, %s372, 143
        %s375 = smul.addr %s374, 4
        %s376 = scalar_lea.vmem %s1, %s375
        %s377 = smul.u32 16, %s22
        %p378 = scmp.lt.s32.totalorder %s22, 8
        %s379 = scalar_select %p378, %s22, 8
        %s380 = scalar_lea.vmem %s2, %s379
        %p381 = scmp.lt.s32.totalorder %s22, 8
        %s382 = scalar_select %p381, %s22, 8
        %s383 = scalar_lea.vmem %s3, %s382
        %s384 = smul.u32 8, %s21
        %p385 = scmp.lt.s32.totalorder %s384, 15
        %s386 = scalar_select %p385, %s384, 15
        %s387 = smul.addr %s386, 4
        %s388 = scalar_lea.vmem %s6, %s387
        %s389 = smul.u32 8, %s21
        %p391 = scmp.eq.s32.totalorder %s22, 0
        // Predicated region
        $region86: #{network_block_forward.5} parent=80 // pred_check
          %p392 = pneg %p391
        $region87: #{network_block_forward.5} parent=80 // pred_check_branch
          %394 = sbr.rel (%p392) target = $region89
        $region88: #{network_block_forward.5} parent=80 // pred_region
          %395 = vst [vmem:[#allocation2] sm:$0xff] 0.0
          %396 = vst [vmem:[#allocation2 + $0x8] sm:$0xff] 0.0
          %397 = vst [vmem:[#allocation2 + $0x10] sm:$0xff] 0.0
          %398 = vst [vmem:[#allocation2 + $0x18] sm:$0xff] 0.0
          %399 = vst [vmem:[#allocation2 + $0x20] sm:$0xff] 0.0
          %400 = vst [vmem:[#allocation2 + $0x28] sm:$0xff] 0.0
          %401 = vst [vmem:[#allocation2 + $0x30] sm:$0xff] 0.0
          %402 = vst [vmem:[#allocation2 + $0x38] sm:$0xff] 0.0
        $region89: #{network_block_forward.5} parent=80 // pred_fallthru
          _
        %v403 = vld [vmem:[%s333] sm:$0xf]
        %v404 = vld [vmem:[%s333 + $0x4] sm:$0xf]
        %v405 = vld [vmem:[%s333 + $0x8] sm:$0xf]
        %v406 = vld [vmem:[%s333 + $0xc] sm:$0xf]
        %v407 = vld [vmem:[%s333 + $0x10] sm:$0xf]
        %v408 = vld [vmem:[%s333 + $0x14] sm:$0xf]
        %v409 = vld [vmem:[%s333 + $0x18] sm:$0xf]
        %v410 = vld [vmem:[%s333 + $0x1c] sm:$0xf]
        %v411 = vunpack.c.l.bf16 %v403
        %v412 = vunpack.c.l.bf16 %v404
        %v413 = vunpack.c.l.bf16 %v405
        %v414 = vunpack.c.l.bf16 %v406
        %v415 = vunpack.c.l.bf16 %v407
        %v416 = vunpack.c.l.bf16 %v408
        %v417 = vunpack.c.l.bf16 %v409
        %v418 = vunpack.c.l.bf16 %v410
        %v419 = vld [vmem:[%s380] sm:$0x1]
        %v421 = vlaneseq
        %v422 = vshrl.u32 %v421, 7
        %v423 = vsub.s32 0, %v422
        %v424 = vrot.slane %v419, %v423
        %v426 = vmul.f32 %v411, %v424
        %v427 = vmul.f32 %v412, %v424
        %v428 = vmul.f32 %v413, %v424
        %v429 = vmul.f32 %v414, %v424
        %v430 = vmul.f32 %v415, %v424
        %v431 = vmul.f32 %v416, %v424
        %v432 = vmul.f32 %v417, %v424
        %v433 = vmul.f32 %v418, %v424
        %v434 = vld [vmem:[%s383] sm:$0x1]
        %v436 = vlaneseq
        %v437 = vshrl.u32 %v436, 7
        %v438 = vsub.s32 0, %v437
        %v439 = vrot.slane %v434, %v438
        %v441 = vadd.f32 %v426, %v439
        %v442 = vadd.f32 %v427, %v439
        %v443 = vadd.f32 %v428, %v439
        %v444 = vadd.f32 %v429, %v439
        %v445 = vadd.f32 %v430, %v439
        %v446 = vadd.f32 %v431, %v439
        %v447 = vadd.f32 %v432, %v439
        %v448 = vadd.f32 %v433, %v439
        %v449 = vmax.f32 %v441, 0.0
        %v450 = vmax.f32 %v442, 0.0
        %v451 = vmax.f32 %v443, 0.0
        %v452 = vmax.f32 %v444, 0.0
        %v453 = vmax.f32 %v445, 0.0
        %v454 = vmax.f32 %v446, 0.0
        %v455 = vmax.f32 %v447, 0.0
        %v456 = vmax.f32 %v448, 0.0
        %v457 = vpack.c.bf16 %v450, %v449
        %v458 = vpack.c.bf16 %v452, %v451
        %v459 = vpack.c.bf16 %v454, %v453
        %v460 = vpack.c.bf16 %v456, %v455
        %v461 = vld [vmem:[#allocation2] sm:$0xff]
        %v462 = vld [vmem:[#allocation2 + $0x8] sm:$0xff]
        %v463 = vld [vmem:[#allocation2 + $0x10] sm:$0xff]
        %v464 = vld [vmem:[#allocation2 + $0x18] sm:$0xff]
        %v465 = vld [vmem:[#allocation2 + $0x20] sm:$0xff]
        %v466 = vld [vmem:[#allocation2 + $0x28] sm:$0xff]
        %v467 = vld [vmem:[#allocation2 + $0x30] sm:$0xff]
        %v468 = vld [vmem:[#allocation2 + $0x38] sm:$0xff]
        %v469 = vld [vmem:[%s376] sm:$0xf]
        %v470 = vld [vmem:[%s376 + $0x4] sm:$0xf]
        %v471 = vld [vmem:[%s376 + $0x8] sm:$0xf]
        %v472 = vld [vmem:[%s376 + $0xc] sm:$0xf]
        %v473 = vld [vmem:[%s376 + $0x10] sm:$0xf]
        %v474 = vld [vmem:[%s376 + $0x14] sm:$0xf]
        %v475 = vld [vmem:[%s376 + $0x18] sm:$0xf]
        %v476 = vld [vmem:[%s376 + $0x1c] sm:$0xf]
        %v477 = vld [vmem:[%s376 + $0x20] sm:$0xf]
        %v478 = vld [vmem:[%s376 + $0x24] sm:$0xf]
        %v479 = vld [vmem:[%s376 + $0x28] sm:$0xf]
        %v480 = vld [vmem:[%s376 + $0x2c] sm:$0xf]
        %v481 = vld [vmem:[%s376 + $0x30] sm:$0xf]
        %v482 = vld [vmem:[%s376 + $0x34] sm:$0xf]
        %v483 = vld [vmem:[%s376 + $0x38] sm:$0xf]
        %v484 = vld [vmem:[%s376 + $0x3c] sm:$0xf]
        %v501 = vunpack.c.l.b16 %v469
        %v502 = vunpack.c.l.b16 %v470
        %v503 = vunpack.c.l.b16 %v471
        %v504 = vunpack.c.l.b16 %v472
        %v505 = vunpack.c.l.b16 %v473
        %v506 = vunpack.c.l.b16 %v474
        %v507 = vunpack.c.l.b16 %v475
        %v508 = vunpack.c.l.b16 %v476
        %v509 = vunpack.c.l.b16 %v477
        %v510 = vunpack.c.l.b16 %v478
        %v511 = vunpack.c.l.b16 %v479
        %v512 = vunpack.c.l.b16 %v480
        %v513 = vunpack.c.l.b16 %v481
        %v514 = vunpack.c.l.b16 %v482
        %v515 = vunpack.c.l.b16 %v483
        %v516 = vunpack.c.l.b16 %v484
        %v517 = vpack.c.b16 %v502, %v501
        %v518 = vpack.c.b16 %v504, %v503
        %v519 = vpack.c.b16 %v506, %v505
        %v520 = vpack.c.b16 %v508, %v507
        %v521 = vpack.c.b16 %v510, %v509
        %v522 = vpack.c.b16 %v512, %v511
        %v523 = vpack.c.b16 %v514, %v513
        %v524 = vpack.c.b16 %v516, %v515
        %533 = vmatprep.subr.bf16.mxu0 0
        %534 = vmatpush1.bf16.msra.mxu0 %v517
        %535 = vmatprep.subr.bf16.mxu0 0
        %536 = vmatpush1.bf16.msra.mxu0 %v518
        %537 = vmatprep.subr.bf16.mxu0 0
        %538 = vmatpush1.bf16.msra.mxu0 %v519
        %539 = vmatprep.subr.bf16.mxu0 0
        %540 = vmatpush1.bf16.msra.mxu0 %v520
        %541 = vmatprep.subr.bf16.mxu0 0
        %542 = vmatpush1.bf16.msra.mxu0 %v521
        %543 = vmatprep.subr.bf16.mxu0 0
        %544 = vmatpush1.bf16.msra.mxu0 %v522
        %545 = vmatprep.subr.bf16.mxu0 0
        %546 = vmatpush1.bf16.msra.mxu0 %v523
        %547 = vmatprep.subr.bf16.mxu0 0
        %548 = vmatpush1.bf16.msra.mxu0 %v524
        %549 = vmatprep.subr.bf16.mxu0 0
        %550 = vmatpush1.bf16.msra.mxu0 0
        %551 = vmatprep.subr.bf16.mxu0 0
        %552 = vmatpush1.bf16.msra.mxu0 0
        %553 = vmatprep.subr.bf16.mxu0 0
        %554 = vmatpush1.bf16.msra.mxu0 0
        %555 = vmatprep.subr.bf16.mxu0 0
        %556 = vmatpush1.bf16.msra.mxu0 0
        %557 = vmatprep.subr.bf16.mxu0 0
        %558 = vmatpush1.bf16.msra.mxu0 0
        %559 = vmatprep.subr.bf16.mxu0 0
        %560 = vmatpush1.bf16.msra.mxu0 0
        %561 = vmatprep.subr.bf16.mxu0 0
        %562 = vmatpush1.bf16.msra.mxu0 0
        %563 = vmatprep.subr.bf16.mxu0 0
        %564 = vmatpush1.bf16.msra.mxu0 0
        %565 = vmatprep.mubr.bf16.mxu0 0
        %566 = vmatmul.mubr.bf16.gmra.mrb[0].mxu0 %v457
        %v567 = vpop.f32.mrb[0].mxu0
        %v568 = vadd.f32 0.0, %v567
        %v569 = vpop.f32.mrb[0].mxu0
        %v570 = vpop.f32.mrb[0].mxu0
        %v571 = vadd.f32 0.0, %v570
        %v572 = vpop.f32.mrb[0].mxu0
        %573 = vmatprep.mubr.bf16.mxu0 0
        %574 = vmatmul.mubr.bf16.gmra.mrb[0].mxu0 %v458
        %v575 = vpop.f32.mrb[0].mxu0
        %v576 = vadd.f32 0.0, %v575
        %v577 = vpop.f32.mrb[0].mxu0
        %v578 = vpop.f32.mrb[0].mxu0
        %v579 = vadd.f32 0.0, %v578
        %v580 = vpop.f32.mrb[0].mxu0
        %581 = vmatprep.mubr.bf16.mxu0 0
        %582 = vmatmul.mubr.bf16.gmra.mrb[0].mxu0 %v459
        %v583 = vpop.f32.mrb[0].mxu0
        %v584 = vadd.f32 0.0, %v583
        %v585 = vpop.f32.mrb[0].mxu0
        %v586 = vpop.f32.mrb[0].mxu0
        %v587 = vadd.f32 0.0, %v586
        %v588 = vpop.f32.mrb[0].mxu0
        %589 = vmatprep.mubr.bf16.mxu0 0
        %590 = vmatmul.mubr.bf16.gmra.mrb[0].mxu0 %v460
        %v591 = vpop.f32.mrb[0].mxu0
        %v592 = vadd.f32 0.0, %v591
        %v593 = vpop.f32.mrb[0].mxu0
        %v594 = vpop.f32.mrb[0].mxu0
        %v595 = vadd.f32 0.0, %v594
        %v596 = vpop.f32.mrb[0].mxu0
        %597 = vdwg.mxu0
        %v598 = vadd.f32 %v461, %v568
        %v599 = vadd.f32 %v462, %v571
        %v600 = vadd.f32 %v463, %v576
        %v601 = vadd.f32 %v464, %v579
        %v602 = vadd.f32 %v465, %v584
        %v603 = vadd.f32 %v466, %v587
        %v604 = vadd.f32 %v467, %v592
        %v605 = vadd.f32 %v468, %v595
        %606 = vst [vmem:[#allocation2] sm:$0xff] %v598
        %607 = vst [vmem:[#allocation2 + $0x8] sm:$0xff] %v599
        %608 = vst [vmem:[#allocation2 + $0x10] sm:$0xff] %v600
        %609 = vst [vmem:[#allocation2 + $0x18] sm:$0xff] %v601
        %610 = vst [vmem:[#allocation2 + $0x20] sm:$0xff] %v602
        %611 = vst [vmem:[#allocation2 + $0x28] sm:$0xff] %v603
        %612 = vst [vmem:[#allocation2 + $0x30] sm:$0xff] %v604
        %613 = vst [vmem:[#allocation2 + $0x38] sm:$0xff] %v605
        %p614 = scmp.eq.s32.totalorder %s22, 8
        // Predicated region
        $region90: #{network_block_forward.5} parent=80 // pred_check
          %p615 = pneg %p614
        $region91: #{network_block_forward.5} parent=80 // pred_check_branch
          %617 = sbr.rel (%p615) target = $region93
        $region92: #{network_block_forward.5} parent=80 // pred_region
          %v618 = vld [vmem:[#allocation2] sm:$0xff]
          %v619 = vld [vmem:[#allocation2 + $0x8] sm:$0xff]
          %v620 = vld [vmem:[#allocation2 + $0x10] sm:$0xff]
          %v621 = vld [vmem:[#allocation2 + $0x18] sm:$0xff]
          %v622 = vld [vmem:[#allocation2 + $0x20] sm:$0xff]
          %v623 = vld [vmem:[#allocation2 + $0x28] sm:$0xff]
          %v624 = vld [vmem:[#allocation2 + $0x30] sm:$0xff]
          %v625 = vld [vmem:[#allocation2 + $0x38] sm:$0xff]
          %v626 = vld [vmem:[%s4] sm:$0x1]
          %v628 = vlaneseq
          %v629 = vshrl.u32 %v628, 7
          %v630 = vsub.s32 0, %v629
          %v631 = vrot.slane %v626, %v630
          %v633 = vmul.f32 %v618, %v631
          %v634 = vmul.f32 %v619, %v631
          %v635 = vmul.f32 %v620, %v631
          %v636 = vmul.f32 %v621, %v631
          %v637 = vmul.f32 %v622, %v631
          %v638 = vmul.f32 %v623, %v631
          %v639 = vmul.f32 %v624, %v631
          %v640 = vmul.f32 %v625, %v631
          %v641 = vld [vmem:[%s5] sm:$0x1]
          %v643 = vlaneseq
          %v644 = vshrl.u32 %v643, 7
          %v645 = vsub.s32 0, %v644
          %v646 = vrot.slane %v641, %v645
          %v648 = vadd.f32 %v633, %v646
          %v649 = vadd.f32 %v634, %v646
          %v650 = vadd.f32 %v635, %v646
          %v651 = vadd.f32 %v636, %v646
          %v652 = vadd.f32 %v637, %v646
          %v653 = vadd.f32 %v638, %v646
          %v654 = vadd.f32 %v639, %v646
          %v655 = vadd.f32 %v640, %v646
          %v656 = vmax.f32 %v648, 0.0
          %v657 = vmax.f32 %v649, 0.0
          %v658 = vmax.f32 %v650, 0.0
          %v659 = vmax.f32 %v651, 0.0
          %v660 = vmax.f32 %v652, 0.0
          %v661 = vmax.f32 %v653, 0.0
          %v662 = vmax.f32 %v654, 0.0
          %v663 = vmax.f32 %v655, 0.0
          %v664 = vpack.c.bf16 %v657, %v656
          %v665 = vpack.c.bf16 %v659, %v658
          %v666 = vpack.c.bf16 %v661, %v660
          %v667 = vpack.c.bf16 %v663, %v662
          %v672 = vunpack.c.l.b16 %v664
          %v673 = vunpack.c.h.b16 %v664
          %v674 = vunpack.c.l.b16 %v665
          %v675 = vunpack.c.h.b16 %v665
          %v676 = vunpack.c.l.b16 %v666
          %v677 = vunpack.c.h.b16 %v666
          %v678 = vunpack.c.l.b16 %v667
          %v679 = vunpack.c.h.b16 %v667
          %v680 = vpack.c.b16 %v672, %v672
          %v681 = vpack.c.b16 %v673, %v673
          %v682 = vpack.c.b16 %v674, %v674
          %v683 = vpack.c.b16 %v675, %v675
          %v684 = vpack.c.b16 %v676, %v676
          %v685 = vpack.c.b16 %v677, %v677
          %v686 = vpack.c.b16 %v678, %v678
          %v687 = vpack.c.b16 %v679, %v679
          %696 = vst [vmem:[%s388] sm:$0xf] %v680
          %697 = vst [vmem:[%s388 + $0x4] sm:$0xf] %v681
          %698 = vst [vmem:[%s388 + $0x8] sm:$0xf] %v682
          %699 = vst [vmem:[%s388 + $0xc] sm:$0xf] %v683
          %700 = vst [vmem:[%s388 + $0x10] sm:$0xf] %v684
          %701 = vst [vmem:[%s388 + $0x14] sm:$0xf] %v685
          %702 = vst [vmem:[%s388 + $0x18] sm:$0xf] %v686
          %703 = vst [vmem:[%s388 + $0x1c] sm:$0xf] %v687
        $region93: #{network_block_forward.5} parent=80 // pred_fallthru
          _
        %s704 = smul.u32 8, %s21
        %p705 = scmp.lt.s32.totalorder %s704, 15
        %s706 = scalar_select %p705, %s704, 15
        %s707 = smul.addr %s706, 4
        %s708 = scalar_lea.vmem %s6, %s707
        // Predicated region
        $region94: #{network_block_forward.5} parent=80 // pred_check
          %p709 = pneg %p195
        $region95: #{network_block_forward.5} parent=80 // pred_check_branch
          %711 = sbr.rel (%p709) target = $region97
        $region96: #{network_block_forward.5} parent=80 // pred_region
          %s712 = smul.u32 8, %s21
        $region97: #{network_block_forward.5} parent=80 // pred_fallthru
          _
      $region81: #{network_block_forward.5} parent=5 // pred_fallthru
        _
      %p713 = scmp.le.s32.totalorder 2, %s12
      // Predicated region
      $region98: #{network_block_forward.5} parent=5 // pred_check
        %p714 = pneg %p713
      $region99: #{network_block_forward.5} parent=5 // pred_check_branch
        %716 = sbr.rel (%p714) target = $region101
      $region100: #{network_block_forward.5} parent=5 // pred_region
        %s717 = ssub.s32 %s12, 2
        // Predicated region
        $region102: #{network_block_forward.5} parent=100 // pred_check
          %p718 = pneg %p201
        $region103: #{network_block_forward.5} parent=100 // pred_check_branch
          %720 = sbr.rel (%p718) target = $region105
        $region104: #{network_block_forward.5} parent=100 // pred_region
          %s721 = smul.u32 8, %s23
          %p722 = scmp.lt.s32.totalorder %s721, 15
          %s723 = scalar_select %p722, %s721, 15
          %s724 = smul.addr %s723, 4
          %s725 = scalar_lea.vmem %s6, %s724
        $region105: #{network_block_forward.5} parent=100 // pred_fallthru
          _
      $region101: #{network_block_forward.5} parent=5 // pred_fallthru
        _
    $region6: #{network_block_forward.5} parent=1 // loop_footer
      %s16 = sadd.s32 1, %s12
    $region7: #{network_block_forward.5} parent=1 // loop_footer_branch
      %11 = sbr.rel target = $region3
    $region8: #{network_block_forward.5} parent=1 // loop_exit
      _

// kernel: network_block_forward.6
$region0: #{network_block_forward.6}
  #allocation0 [shape = 'u32[]', space=smem, size = 0x4, offset = 0x4, fixed_abs, tag = 'smem constant byte address 0x4 - core index']
  #allocation1 [shape = 'u32[144,128]{1,0:T(1,128)}', space=vmem, size = 0x12000, scoped, tag = 'internal scratch']
  #allocation2 [shape = 'f32[64,128]{1,0:T(8,128)}', space=vmem, size = 0x8000, scoped, tag = 'scratch operand']
  %s0 = inlined_call_operand.vmem [shape: bf16[128,128], index: 0, kind: input, shape index: {}]
  %s1 = inlined_call_operand.vmem [shape: bf16[128,128], index: 1, kind: input, shape index: {}]
  %s2 = inlined_call_operand.vmem [shape: f32[1,128], index: 2, kind: input, shape index: {}]
  %s3 = inlined_call_operand.vmem [shape: f32[1,128], index: 3, kind: input, shape index: {}]
  %s4 = inlined_call_operand.vmem [shape: f32[128,128], index: 4, kind: output, shape index: {}]
  %s5 = sld [smem:[#allocation0]]
  $region57: #{network_block_forward.6} parent=0
    _
  %s7 = ssub.s32 1, %s5
  %s8 = scalar_select 0, %s7, %s5
  loop: start=0, step=1, limit=4
  $region2: #{network_block_forward.6} parent=0 // loop_pre_header
    _
  $region3: #{network_block_forward.6} parent=0 // loop_header
    %s10 = sphi 0, %s14
    %p11 = scmp.ge.s32.totalorder %s10, 4
    %s17 = sphi 0, %s29
    %s18 = sphi 0, %s25
    %s19 = sphi 0, %s17
    %s20 = sphi 0, %s18
    %s21 = sphi 0, %s19
    %s22 = sphi 0, %s20
    %s34 = sphi 0, %s36
    %s37 = sphi 0, %s34
    %s38 = sphi 0, %s37
    %s54 = sphi 0, %s38
    %s60 = sphi 0, %s62
    %s63 = sphi 0, %s60
    %s64 = sphi 0, %s63
    %s80 = sphi 0, %s64
    %s86 = sphi 0, %s88
    %s89 = sphi 0, %s86
    %s90 = sphi 0, %s89
    %s106 = sphi 0, %s90
    %s112 = sphi 0, %s114
    %s115 = sphi 0, %s112
    %s116 = sphi 0, %s115
    %s132 = sphi 0, %s116
    %s138 = sphi 0, %s140
    %s141 = sphi 0, %s138
    %s142 = sphi 0, %s141
    %s158 = sphi 0, %s142
  $region4: #{network_block_forward.6} parent=0 // loop_header_branch
    %13 = sbr.rel (%p11) target = $region8
  $region5: #{network_block_forward.6} parent=0 // loop_body
    %s15 = ssub.s32 %s10, 1
    %s16 = ssub.s32 %s10, 2
    %s23 = sadd.s32 1, %s18
    %p24 = scmp.ge.s32.totalorder %s23, 1
    %s25 = scalar_select %p24, 0, %s23
    %s26 = sadd.s32 1, %s17
    %s27 = scalar_select %p24, %s26, %s17
    %p28 = scmp.ge.s32.totalorder %s27, 2
    %s29 = scalar_select %p28, 0, %s27
    %s30 = ssub.s32 %s17, %s29
    %s31 = ssub.s32 %s18, %s25
    %s32 = sor.u32 %s30, %s31
    %p33 = scmp.eq.s32.totalorder %s32, 0
    %s35 = sadd.s32 %s34, 1
    %s36 = scalar_select %p33, %s34, %s35
    %p39 = pneg %p33
    %p40 = scmp.eq.s32.totalorder %s10, 1
    %p41 = por %p39, %p40
    %p42 = scmp.ne.s32.totalorder %s34, %s37
    %p43 = scmp.eq.s32.totalorder %s10, 0
    %p44 = por %p42, %p43
    %p45 = scmp.ne.s32.totalorder %s34, %s37
    %p46 = scmp.eq.s32.totalorder %s15, 1
    %p47 = por %p45, %p46
    %p48 = scmp.ne.s32.totalorder %s37, %s38
    %p49 = scmp.eq.s32.totalorder %s15, 0
    %p50 = por %p48, %p49
    %p51 = scmp.ne.s32.totalorder %s37, %s38
    %p52 = scmp.eq.s32.totalorder %s16, 1
    %p53 = por %p51, %p52
    %p55 = scmp.ne.s32.totalorder %s38, %s54
    %p56 = scmp.eq.s32.totalorder %s16, 0
    %p57 = por %p55, %p56
    %s58 = ssub.s32 %s18, %s25
    %p59 = scmp.eq.s32.totalorder %s58, 0
    %s61 = sadd.s32 %s60, 1
    %s62 = scalar_select %p59, %s60, %s61
    %p65 = pneg %p59
    %p66 = scmp.eq.s32.totalorder %s10, 1
    %p67 = por %p65, %p66
    %p68 = scmp.ne.s32.totalorder %s60, %s63
    %p69 = scmp.eq.s32.totalorder %s10, 0
    %p70 = por %p68, %p69
    %p71 = scmp.ne.s32.totalorder %s60, %s63
    %p72 = scmp.eq.s32.totalorder %s15, 1
    %p73 = por %p71, %p72
    %p74 = scmp.ne.s32.totalorder %s63, %s64
    %p75 = scmp.eq.s32.totalorder %s15, 0
    %p76 = por %p74, %p75
    %p77 = scmp.ne.s32.totalorder %s63, %s64
    %p78 = scmp.eq.s32.totalorder %s16, 1
    %p79 = por %p77, %p78
    %p81 = scmp.ne.s32.totalorder %s64, %s80
    %p82 = scmp.eq.s32.totalorder %s16, 0
    %p83 = por %p81, %p82
    %s84 = ssub.s32 %s18, %s25
    %p85 = scmp.eq.s32.totalorder %s84, 0
    %s87 = sadd.s32 %s86, 1
    %s88 = scalar_select %p85, %s86, %s87
    %p91 = pneg %p85
    %p92 = scmp.eq.s32.totalorder %s10, 1
    %p93 = por %p91, %p92
    %p94 = scmp.ne.s32.totalorder %s86, %s89
    %p95 = scmp.eq.s32.totalorder %s10, 0
    %p96 = por %p94, %p95
    %p97 = scmp.ne.s32.totalorder %s86, %s89
    %p98 = scmp.eq.s32.totalorder %s15, 1
    %p99 = por %p97, %p98
    %p100 = scmp.ne.s32.totalorder %s89, %s90
    %p101 = scmp.eq.s32.totalorder %s15, 0
    %p102 = por %p100, %p101
    %p103 = scmp.ne.s32.totalorder %s89, %s90
    %p104 = scmp.eq.s32.totalorder %s16, 1
    %p105 = por %p103, %p104
    %p107 = scmp.ne.s32.totalorder %s90, %s106
    %p108 = scmp.eq.s32.totalorder %s16, 0
    %p109 = por %p107, %p108
    %s110 = ssub.s32 %s18, %s25
    %p111 = scmp.eq.s32.totalorder %s110, 0
    %s113 = sadd.s32 %s112, 1
    %s114 = scalar_select %p111, %s112, %s113
    %p117 = pneg %p111
    %p118 = scmp.eq.s32.totalorder %s10, 1
    %p119 = por %p117, %p118
    %p120 = scmp.ne.s32.totalorder %s112, %s115
    %p121 = scmp.eq.s32.totalorder %s10, 0
    %p122 = por %p120, %p121
    %p123 = scmp.ne.s32.totalorder %s112, %s115
    %p124 = scmp.eq.s32.totalorder %s15, 1
    %p125 = por %p123, %p124
    %p126 = scmp.ne.s32.totalorder %s115, %s116
    %p127 = scmp.eq.s32.totalorder %s15, 0
    %p128 = por %p126, %p127
    %p129 = scmp.ne.s32.totalorder %s115, %s116
    %p130 = scmp.eq.s32.totalorder %s16, 1
    %p131 = por %p129, %p130
    %p133 = scmp.ne.s32.totalorder %s116, %s132
    %p134 = scmp.eq.s32.totalorder %s16, 0
    %p135 = por %p133, %p134
    %s136 = ssub.s32 %s17, %s29
    %p137 = scmp.eq.s32.totalorder %s136, 0
    %s139 = sadd.s32 %s138, 1
    %s140 = scalar_select %p137, %s138, %s139
    %p143 = pneg %p137
    %p144 = scmp.eq.s32.totalorder %s10, 1
    %p145 = por %p143, %p144
    %p146 = scmp.ne.s32.totalorder %s138, %s141
    %p147 = scmp.eq.s32.totalorder %s10, 0
    %p148 = por %p146, %p147
    %p149 = scmp.ne.s32.totalorder %s138, %s141
    %p150 = scmp.eq.s32.totalorder %s15, 1
    %p151 = por %p149, %p150
    %p152 = scmp.ne.s32.totalorder %s141, %s142
    %p153 = scmp.eq.s32.totalorder %s15, 0
    %p154 = por %p152, %p153
    %p155 = scmp.ne.s32.totalorder %s141, %s142
    %p156 = scmp.eq.s32.totalorder %s16, 1
    %p157 = por %p155, %p156
    %p159 = scmp.ne.s32.totalorder %s142, %s158
    %p160 = scmp.eq.s32.totalorder %s16, 0
    %p161 = por %p159, %p160
    %p162 = scmp.le.s32.totalorder 1, %s10
    %p163 = scmp.lt.s32.totalorder %s10, 3
    %p164 = pnand %p162, %p163
    %p165 = pneg %p164
    // Predicated region
    $region9: #{network_block_forward.6} parent=5 // pred_check
      _
    $region10: #{network_block_forward.6} parent=5 // pred_check_branch
      %167 = sbr.rel (%p164) target = $region12
    $region11: #{network_block_forward.6} parent=5 // pred_region
      %s168 = ssub.s32 %s10, 1
      // Predicated region
      $region13: #{network_block_forward.6} parent=11 // pred_check
        %p169 = pneg %p76
      $region14: #{network_block_forward.6} parent=11 // pred_check_branch
        %171 = sbr.rel (%p169) target = $region16
      $region15: #{network_block_forward.6} parent=11 // pred_region
        %s172 = smul.u32 16, %s20
        %p173 = scmp.lt.s32.totalorder %s172, 15
        %s174 = scalar_select %p173, %s172, 15
        %s175 = smul.addr %s174, 4
        %s176 = scalar_lea.vmem %s1, %s175
        %s177 = smul.u32 16, %s20
      $region16: #{network_block_forward.6} parent=11 // pred_fallthru
        _
      // Predicated region
      $region17: #{network_block_forward.6} parent=11 // pred_check
        %p178 = pneg %p102
      $region18: #{network_block_forward.6} parent=11 // pred_check_branch
        %180 = sbr.rel (%p178) target = $region20
      $region19: #{network_block_forward.6} parent=11 // pred_region
        %p181 = scmp.lt.s32.totalorder %s20, 0
        %s182 = scalar_select %p181, %s20, 0
        %s183 = scalar_lea.vmem %s2, %s182
      $region20: #{network_block_forward.6} parent=11 // pred_fallthru
        _
      // Predicated region
      $region21: #{network_block_forward.6} parent=11 // pred_check
        %p184 = pneg %p128
      $region22: #{network_block_forward.6} parent=11 // pred_check_branch
        %186 = sbr.rel (%p184) target = $region24
      $region23: #{network_block_forward.6} parent=11 // pred_region
        %p187 = scmp.lt.s32.totalorder %s20, 0
        %s188 = scalar_select %p187, %s20, 0
        %s189 = scalar_lea.vmem %s3, %s188
      $region24: #{network_block_forward.6} parent=11 // pred_fallthru
        _
    $region12: #{network_block_forward.6} parent=5 // pred_fallthru
      _
    %p190 = scmp.lt.s32.totalorder %s10, 2
    // Predicated region
    $region25: #{network_block_forward.6} parent=5 // pred_check
      %p191 = pneg %p190
    $region26: #{network_block_forward.6} parent=5 // pred_check_branch
      %193 = sbr.rel (%p191) target = $region28
    $region27: #{network_block_forward.6} parent=5 // pred_region
      // Predicated region
      $region29: #{network_block_forward.6} parent=27 // pred_check
        %p194 = pneg %p44
      $region30: #{network_block_forward.6} parent=27 // pred_check_branch
        %196 = sbr.rel (%p194) target = $region32
      $region31: #{network_block_forward.6} parent=27 // pred_region
        %s197 = smul.u32 8, %s17
        %p198 = scmp.lt.s32.totalorder %s197, 15
        %s199 = scalar_select %p198, %s197, 15
        %p200 = scmp.lt.s32.totalorder %s18, 0
        %s201 = scalar_select %p200, %s18, 0
        %s202 = sadd.s32 %s201, %s199
        %s203 = smul.addr %s202, 4
        %s204 = scalar_lea.vmem %s0, %s203
        %s205 = smul.u32 8, %s17
      $region32: #{network_block_forward.6} parent=27 // pred_fallthru
        _
    $region28: #{network_block_forward.6} parent=5 // pred_fallthru
      _
    %p206 = scmp.le.s32.totalorder 1, %s10
    %p207 = scmp.lt.s32.totalorder %s10, 3
    %p208 = pnand %p206, %p207
    %p209 = pneg %p208
    // Predicated region
    $region33: #{network_block_forward.6} parent=5 // pred_check
      _
    $region34: #{network_block_forward.6} parent=5 // pred_check_branch
      %211 = sbr.rel (%p208) target = $region36
    $region35: #{network_block_forward.6} parent=5 // pred_region
      %s212 = ssub.s32 %s10, 1
      %s213 = smul.u32 8, %s19
      %p214 = scmp.lt.s32.totalorder %s213, 15
      %s215 = scalar_select %p214, %s213, 15
      %p216 = scmp.lt.s32.totalorder %s20, 0
      %s217 = scalar_select %p216, %s20, 0
      %s218 = sadd.s32 %s217, %s215
      %s219 = smul.addr %s218, 4
      %s220 = scalar_lea.vmem %s0, %s219
      %p221 = pneg %p50
      %p222 = pneg %p47
      %s223 = smul.u32 16, %s20
      %p224 = scmp.lt.s32.totalorder %s223, 15
      %s225 = scalar_select %p224, %s223, 15
      %s226 = smul.addr %s225, 4
      %s227 = scalar_lea.vmem %s1, %s226
      %p228 = pneg %p76
      %p229 = pneg %p73
      %p230 = scmp.lt.s32.totalorder %s20, 0
      %s231 = scalar_select %p230, %s20, 0
      %s232 = scalar_lea.vmem %s2, %s231
      %p233 = pneg %p102
      %p234 = pneg %p99
      %p235 = scmp.lt.s32.totalorder %s20, 0
      %s236 = scalar_select %p235, %s20, 0
      %s237 = scalar_lea.vmem %s3, %s236
      %p238 = pneg %p128
      %p239 = pneg %p125
      %p240 = pneg %p154
      %p241 = pneg %p151
      %s242 = smul.u32 8, %s19
      %p243 = scmp.lt.s32.totalorder %s242, 15
      %s244 = scalar_select %p243, %s242, 15
      %s245 = smul.addr %s244, 8
      %s246 = scalar_lea.vmem %s4, %s245
      %s247 = smul.u32 8, %s19
      %p248 = scmp.lt.s32.totalorder %s247, 15
      %s249 = scalar_select %p248, %s247, 15
      %p250 = scmp.lt.s32.totalorder %s20, 0
      %s251 = scalar_select %p250, %s20, 0
      %s252 = sadd.s32 %s251, %s249
      %s253 = smul.addr %s252, 4
      %s254 = scalar_lea.vmem %s0, %s253
      %s255 = smul.u32 8, %s19
      %s256 = smul.u32 16, %s20
      %p257 = scmp.lt.s32.totalorder %s256, 15
      %s258 = scalar_select %p257, %s256, 15
      %s259 = smul.addr %s258, 4
      %s260 = scalar_lea.vmem %s1, %s259
      %s261 = smul.u32 16, %s20
      %p262 = scmp.lt.s32.totalorder %s20, 0
      %s263 = scalar_select %p262, %s20, 0
      %s264 = scalar_lea.vmem %s2, %s263
      %p265 = scmp.lt.s32.totalorder %s20, 0
      %s266 = scalar_select %p265, %s20, 0
      %s267 = scalar_lea.vmem %s3, %s266
      %s268 = smul.u32 8, %s19
      %p269 = scmp.lt.s32.totalorder %s268, 15
      %s270 = scalar_select %p269, %s268, 15
      %s271 = smul.addr %s270, 8
      %s272 = scalar_lea.vmem %s4, %s271
      %s273 = smul.u32 8, %s19
      %p275 = scmp.eq.s32.totalorder %s20, 0
      // Predicated region
      $region37: #{network_block_forward.6} parent=35 // pred_check
        %p276 = pneg %p275
      $region38: #{network_block_forward.6} parent=35 // pred_check_branch
        %278 = sbr.rel (%p276) target = $region40
      $region39: #{network_block_forward.6} parent=35 // pred_region
        %279 = vst [vmem:[#allocation2] sm:$0xff] 0.0
        %280 = vst [vmem:[#allocation2 + $0x8] sm:$0xff] 0.0
        %281 = vst [vmem:[#allocation2 + $0x10] sm:$0xff] 0.0
        %282 = vst [vmem:[#allocation2 + $0x18] sm:$0xff] 0.0
        %283 = vst [vmem:[#allocation2 + $0x20] sm:$0xff] 0.0
        %284 = vst [vmem:[#allocation2 + $0x28] sm:$0xff] 0.0
        %285 = vst [vmem:[#allocation2 + $0x30] sm:$0xff] 0.0
        %286 = vst [vmem:[#allocation2 + $0x38] sm:$0xff] 0.0
      $region40: #{network_block_forward.6} parent=35 // pred_fallthru
        _
      %v287 = vld [vmem:[%s254] sm:$0xf]
      %v288 = vld [vmem:[%s254 + $0x4] sm:$0xf]
      %v289 = vld [vmem:[%s254 + $0x8] sm:$0xf]
      %v290 = vld [vmem:[%s254 + $0xc] sm:$0xf]
      %v291 = vld [vmem:[%s254 + $0x10] sm:$0xf]
      %v292 = vld [vmem:[%s254 + $0x14] sm:$0xf]
      %v293 = vld [vmem:[%s254 + $0x18] sm:$0xf]
      %v294 = vld [vmem:[%s254 + $0x1c] sm:$0xf]
      %v295 = vunpack.c.l.bf16 %v287
      %v296 = vunpack.c.l.bf16 %v288
      %v297 = vunpack.c.l.bf16 %v289
      %v298 = vunpack.c.l.bf16 %v290
      %v299 = vunpack.c.l.bf16 %v291
      %v300 = vunpack.c.l.bf16 %v292
      %v301 = vunpack.c.l.bf16 %v293
      %v302 = vunpack.c.l.bf16 %v294
      %v303 = vld [vmem:[%s264] sm:$0x1]
      %v305 = vlaneseq
      %v306 = vshrl.u32 %v305, 7
      %v307 = vsub.s32 0, %v306
      %v308 = vrot.slane %v303, %v307
      %v310 = vmul.f32 %v295, %v308
      %v311 = vmul.f32 %v296, %v308
      %v312 = vmul.f32 %v297, %v308
      %v313 = vmul.f32 %v298, %v308
      %v314 = vmul.f32 %v299, %v308
      %v315 = vmul.f32 %v300, %v308
      %v316 = vmul.f32 %v301, %v308
      %v317 = vmul.f32 %v302, %v308
      %v318 = vld [vmem:[%s267] sm:$0x1]
      %v320 = vlaneseq
      %v321 = vshrl.u32 %v320, 7
      %v322 = vsub.s32 0, %v321
      %v323 = vrot.slane %v318, %v322
      %v325 = vadd.f32 %v310, %v323
      %v326 = vadd.f32 %v311, %v323
      %v327 = vadd.f32 %v312, %v323
      %v328 = vadd.f32 %v313, %v323
      %v329 = vadd.f32 %v314, %v323
      %v330 = vadd.f32 %v315, %v323
      %v331 = vadd.f32 %v316, %v323
      %v332 = vadd.f32 %v317, %v323
      %v333 = vmax.f32 %v325, 0.0
      %v334 = vmax.f32 %v326, 0.0
      %v335 = vmax.f32 %v327, 0.0
      %v336 = vmax.f32 %v328, 0.0
      %v337 = vmax.f32 %v329, 0.0
      %v338 = vmax.f32 %v330, 0.0
      %v339 = vmax.f32 %v331, 0.0
      %v340 = vmax.f32 %v332, 0.0
      %v341 = vpack.c.bf16 %v334, %v333
      %v342 = vpack.c.bf16 %v336, %v335
      %v343 = vpack.c.bf16 %v338, %v337
      %v344 = vpack.c.bf16 %v340, %v339
      %v345 = vld [vmem:[#allocation2] sm:$0xff]
      %v346 = vld [vmem:[#allocation2 + $0x8] sm:$0xff]
      %v347 = vld [vmem:[#allocation2 + $0x10] sm:$0xff]
      %v348 = vld [vmem:[#allocation2 + $0x18] sm:$0xff]
      %v349 = vld [vmem:[#allocation2 + $0x20] sm:$0xff]
      %v350 = vld [vmem:[#allocation2 + $0x28] sm:$0xff]
      %v351 = vld [vmem:[#allocation2 + $0x30] sm:$0xff]
      %v352 = vld [vmem:[#allocation2 + $0x38] sm:$0xff]
      %v353 = vld [vmem:[%s260] sm:$0xf]
      %v354 = vld [vmem:[%s260 + $0x4] sm:$0xf]
      %v355 = vld [vmem:[%s260 + $0x8] sm:$0xf]
      %v356 = vld [vmem:[%s260 + $0xc] sm:$0xf]
      %v357 = vld [vmem:[%s260 + $0x10] sm:$0xf]
      %v358 = vld [vmem:[%s260 + $0x14] sm:$0xf]
      %v359 = vld [vmem:[%s260 + $0x18] sm:$0xf]
      %v360 = vld [vmem:[%s260 + $0x1c] sm:$0xf]
      %v361 = vld [vmem:[%s260 + $0x20] sm:$0xf]
      %v362 = vld [vmem:[%s260 + $0x24] sm:$0xf]
      %v363 = vld [vmem:[%s260 + $0x28] sm:$0xf]
      %v364 = vld [vmem:[%s260 + $0x2c] sm:$0xf]
      %v365 = vld [vmem:[%s260 + $0x30] sm:$0xf]
      %v366 = vld [vmem:[%s260 + $0x34] sm:$0xf]
      %v367 = vld [vmem:[%s260 + $0x38] sm:$0xf]
      %v368 = vld [vmem:[%s260 + $0x3c] sm:$0xf]
      %v385 = vunpack.c.l.b16 %v353
      %v386 = vunpack.c.l.b16 %v354
      %v387 = vunpack.c.l.b16 %v355
      %v388 = vunpack.c.l.b16 %v356
      %v389 = vunpack.c.l.b16 %v357
      %v390 = vunpack.c.l.b16 %v358
      %v391 = vunpack.c.l.b16 %v359
      %v392 = vunpack.c.l.b16 %v360
      %v393 = vunpack.c.l.b16 %v361
      %v394 = vunpack.c.l.b16 %v362
      %v395 = vunpack.c.l.b16 %v363
      %v396 = vunpack.c.l.b16 %v364
      %v397 = vunpack.c.l.b16 %v365
      %v398 = vunpack.c.l.b16 %v366
      %v399 = vunpack.c.l.b16 %v367
      %v400 = vunpack.c.l.b16 %v368
      %v401 = vpack.c.b16 %v386, %v385
      %v402 = vpack.c.b16 %v388, %v387
      %v403 = vpack.c.b16 %v390, %v389
      %v404 = vpack.c.b16 %v392, %v391
      %v405 = vpack.c.b16 %v394, %v393
      %v406 = vpack.c.b16 %v396, %v395
      %v407 = vpack.c.b16 %v398, %v397
      %v408 = vpack.c.b16 %v400, %v399
      %417 = vmatprep.subr.bf16.mxu0 0
      %418 = vmatpush1.bf16.msra.mxu0 %v401
      %419 = vmatprep.subr.bf16.mxu0 0
      %420 = vmatpush1.bf16.msra.mxu0 %v402
      %421 = vmatprep.subr.bf16.mxu0 0
      %422 = vmatpush1.bf16.msra.mxu0 %v403
      %423 = vmatprep.subr.bf16.mxu0 0
      %424 = vmatpush1.bf16.msra.mxu0 %v404
      %425 = vmatprep.subr.bf16.mxu0 0
      %426 = vmatpush1.bf16.msra.mxu0 %v405
      %427 = vmatprep.subr.bf16.mxu0 0
      %428 = vmatpush1.bf16.msra.mxu0 %v406
      %429 = vmatprep.subr.bf16.mxu0 0
      %430 = vmatpush1.bf16.msra.mxu0 %v407
      %431 = vmatprep.subr.bf16.mxu0 0
      %432 = vmatpush1.bf16.msra.mxu0 %v408
      %433 = vmatprep.subr.bf16.mxu0 0
      %434 = vmatpush1.bf16.msra.mxu0 0
      %435 = vmatprep.subr.bf16.mxu0 0
      %436 = vmatpush1.bf16.msra.mxu0 0
      %437 = vmatprep.subr.bf16.mxu0 0
      %438 = vmatpush1.bf16.msra.mxu0 0
      %439 = vmatprep.subr.bf16.mxu0 0
      %440 = vmatpush1.bf16.msra.mxu0 0
      %441 = vmatprep.subr.bf16.mxu0 0
      %442 = vmatpush1.bf16.msra.mxu0 0
      %443 = vmatprep.subr.bf16.mxu0 0
      %444 = vmatpush1.bf16.msra.mxu0 0
      %445 = vmatprep.subr.bf16.mxu0 0
      %446 = vmatpush1.bf16.msra.mxu0 0
      %447 = vmatprep.subr.bf16.mxu0 0
      %448 = vmatpush1.bf16.msra.mxu0 0
      %449 = vmatprep.mubr.bf16.mxu0 0
      %450 = vmatmul.mubr.bf16.gmra.mrb[0].mxu0 %v341
      %v451 = vpop.f32.mrb[0].mxu0
      %v452 = vadd.f32 0.0, %v451
      %v453 = vpop.f32.mrb[0].mxu0
      %v454 = vpop.f32.mrb[0].mxu0
      %v455 = vadd.f32 0.0, %v454
      %v456 = vpop.f32.mrb[0].mxu0
      %457 = vmatprep.mubr.bf16.mxu0 0
      %458 = vmatmul.mubr.bf16.gmra.mrb[0].mxu0 %v342
      %v459 = vpop.f32.mrb[0].mxu0
      %v460 = vadd.f32 0.0, %v459
      %v461 = vpop.f32.mrb[0].mxu0
      %v462 = vpop.f32.mrb[0].mxu0
      %v463 = vadd.f32 0.0, %v462
      %v464 = vpop.f32.mrb[0].mxu0
      %465 = vmatprep.mubr.bf16.mxu0 0
      %466 = vmatmul.mubr.bf16.gmra.mrb[0].mxu0 %v343
      %v467 = vpop.f32.mrb[0].mxu0
      %v468 = vadd.f32 0.0, %v467
      %v469 = vpop.f32.mrb[0].mxu0
      %v470 = vpop.f32.mrb[0].mxu0
      %v471 = vadd.f32 0.0, %v470
      %v472 = vpop.f32.mrb[0].mxu0
      %473 = vmatprep.mubr.bf16.mxu0 0
      %474 = vmatmul.mubr.bf16.gmra.mrb[0].mxu0 %v344
      %v475 = vpop.f32.mrb[0].mxu0
      %v476 = vadd.f32 0.0, %v475
      %v477 = vpop.f32.mrb[0].mxu0
      %v478 = vpop.f32.mrb[0].mxu0
      %v479 = vadd.f32 0.0, %v478
      %v480 = vpop.f32.mrb[0].mxu0
      %481 = vdwg.mxu0
      %v482 = vadd.f32 %v345, %v452
      %v483 = vadd.f32 %v346, %v455
      %v484 = vadd.f32 %v347, %v460
      %v485 = vadd.f32 %v348, %v463
      %v486 = vadd.f32 %v349, %v468
      %v487 = vadd.f32 %v350, %v471
      %v488 = vadd.f32 %v351, %v476
      %v489 = vadd.f32 %v352, %v479
      %490 = vst [vmem:[#allocation2] sm:$0xff] %v482
      %491 = vst [vmem:[#allocation2 + $0x8] sm:$0xff] %v483
      %492 = vst [vmem:[#allocation2 + $0x10] sm:$0xff] %v484
      %493 = vst [vmem:[#allocation2 + $0x18] sm:$0xff] %v485
      %494 = vst [vmem:[#allocation2 + $0x20] sm:$0xff] %v486
      %495 = vst [vmem:[#allocation2 + $0x28] sm:$0xff] %v487
      %496 = vst [vmem:[#allocation2 + $0x30] sm:$0xff] %v488
      %497 = vst [vmem:[#allocation2 + $0x38] sm:$0xff] %v489
      // Predicated region
      $region41: #{network_block_forward.6} parent=35 // pred_check
        %p498 = pneg %p275
      $region42: #{network_block_forward.6} parent=35 // pred_check_branch
        %500 = sbr.rel (%p498) target = $region44
      $region43: #{network_block_forward.6} parent=35 // pred_region
        %v501 = vld [vmem:[#allocation2] sm:$0xff]
        %v502 = vld [vmem:[#allocation2 + $0x8] sm:$0xff]
        %v503 = vld [vmem:[#allocation2 + $0x10] sm:$0xff]
        %v504 = vld [vmem:[#allocation2 + $0x18] sm:$0xff]
        %v505 = vld [vmem:[#allocation2 + $0x20] sm:$0xff]
        %v506 = vld [vmem:[#allocation2 + $0x28] sm:$0xff]
        %v507 = vld [vmem:[#allocation2 + $0x30] sm:$0xff]
        %v508 = vld [vmem:[#allocation2 + $0x38] sm:$0xff]
        %509 = vst [vmem:[%s272] sm:$0xff] %v501
        %510 = vst [vmem:[%s272 + $0x8] sm:$0xff] %v502
        %511 = vst [vmem:[%s272 + $0x10] sm:$0xff] %v503
        %512 = vst [vmem:[%s272 + $0x18] sm:$0xff] %v504
        %513 = vst [vmem:[%s272 + $0x20] sm:$0xff] %v505
        %514 = vst [vmem:[%s272 + $0x28] sm:$0xff] %v506
        %515 = vst [vmem:[%s272 + $0x30] sm:$0xff] %v507
        %516 = vst [vmem:[%s272 + $0x38] sm:$0xff] %v508
      $region44: #{network_block_forward.6} parent=35 // pred_fallthru
        _
      %s517 = smul.u32 8, %s19
      %p518 = scmp.lt.s32.totalorder %s517, 15
      %s519 = scalar_select %p518, %s517, 15
      %s520 = smul.addr %s519, 8
      %s521 = scalar_lea.vmem %s4, %s520
      // Predicated region
      $region45: #{network_block_forward.6} parent=35 // pred_check
        %p522 = pneg %p151
      $region46: #{network_block_forward.6} parent=35 // pred_check_branch
        %524 = sbr.rel (%p522) target = $region48
      $region47: #{network_block_forward.6} parent=35 // pred_region
        %s525 = smul.u32 8, %s19
      $region48: #{network_block_forward.6} parent=35 // pred_fallthru
        _
    $region36: #{network_block_forward.6} parent=5 // pred_fallthru
      _
    %p526 = scmp.le.s32.totalorder 2, %s10
    // Predicated region
    $region49: #{network_block_forward.6} parent=5 // pred_check
      %p527 = pneg %p526
    $region50: #{network_block_forward.6} parent=5 // pred_check_branch
      %529 = sbr.rel (%p527) target = $region52
    $region51: #{network_block_forward.6} parent=5 // pred_region
      %s530 = ssub.s32 %s10, 2
      // Predicated region
      $region53: #{network_block_forward.6} parent=51 // pred_check
        %p531 = pneg %p157
      $region54: #{network_block_forward.6} parent=51 // pred_check_branch
        %533 = sbr.rel (%p531) target = $region56
      $region55: #{network_block_forward.6} parent=51 // pred_region
        %s534 = smul.u32 8, %s21
        %p535 = scmp.lt.s32.totalorder %s534, 15
        %s536 = scalar_select %p535, %s534, 15
        %s537 = smul.addr %s536, 8
        %s538 = scalar_lea.vmem %s4, %s537
      $region56: #{network_block_forward.6} parent=51 // pred_fallthru
        _
    $region52: #{network_block_forward.6} parent=5 // pred_fallthru
      _
  $region6: #{network_block_forward.6} parent=0 // loop_footer
    %s14 = sadd.s32 1, %s10
  $region7: #{network_block_forward.6} parent=0 // loop_footer_branch
    %9 = sbr.rel target = $region3
  $region8: #{network_block_forward.6} parent=0 // loop_exit
    _

// kernel: network_block_forward.7
$region0: #{network_block_forward.7}
  #allocation0 [shape = 'u32[]', space=smem, size = 0x4, offset = 0x4, fixed_abs, tag = 'smem constant byte address 0x4 - core index']
  #allocation1 [shape = 'u32[144,128]{1,0:T(1,128)}', space=vmem, size = 0x12000, scoped, tag = 'internal scratch']
  #allocation2 [shape = 'f32[64,128]{1,0:T(8,128)}', space=vmem, size = 0x8000, scoped, tag = 'scratch operand']
  %s0 = inlined_call_operand.vmem [shape: bf16[128,1152], index: 0, kind: input, shape index: {}]
  %s1 = inlined_call_operand.vmem [shape: bf16[1152,128], index: 1, kind: input, shape index: {}]
  %s2 = inlined_call_operand.vmem [shape: f32[128,128], index: 2, kind: input, shape index: {}]
  %s3 = inlined_call_operand.vmem [shape: f32[128,128], index: 3, kind: output, shape index: {}]
  %s4 = sld [smem:[#allocation0]]
  $region94: #{network_block_forward.7} parent=0
    _
  %s6 = ssub.s32 1, %s4
  %s7 = scalar_select 0, %s6, %s4
  $region1: #{network_block_forward.7} parent=0
    #allocation3 [shape = 'u8[32768]{0}', space=vmem, size = 0x8000, scoped, tag = 'input window, operand 0']
    loop: start=0, step=1, limit=20
    $region2: #{network_block_forward.7} parent=1 // loop_pre_header
      _
    $region3: #{network_block_forward.7} parent=1 // loop_header
      %s9 = sphi 0, %s13
      %p10 = scmp.ge.s32.totalorder %s9, 20
      %s16 = sphi 0, %s28
      %s17 = sphi 0, %s24
      %s18 = sphi 0, %s16
      %s19 = sphi 0, %s17
      %s20 = sphi 0, %s18
      %s21 = sphi 0, %s19
      %s33 = sphi 0, %s35
      %s36 = sphi 0, %s33
      %s37 = sphi 0, %s36
      %s53 = sphi 0, %s37
      %s59 = sphi 0, %s61
      %s62 = sphi 0, %s59
      %s63 = sphi 0, %s62
      %s79 = sphi 0, %s63
      %s85 = sphi 0, %s87
      %s88 = sphi 0, %s85
      %s89 = sphi 0, %s88
      %s105 = sphi 0, %s89
      %s111 = sphi 0, %s113
      %s114 = sphi 0, %s111
      %s115 = sphi 0, %s114
      %s131 = sphi 0, %s115
    $region4: #{network_block_forward.7} parent=1 // loop_header_branch
      %12 = sbr.rel (%p10) target = $region8
    $region5: #{network_block_forward.7} parent=1 // loop_body
      %s14 = ssub.s32 %s9, 1
      %s15 = ssub.s32 %s9, 2
      %s22 = sadd.s32 1, %s17
      %p23 = scmp.ge.s32.totalorder %s22, 9
      %s24 = scalar_select %p23, 0, %s22
      %s25 = sadd.s32 1, %s16
      %s26 = scalar_select %p23, %s25, %s16
      %p27 = scmp.ge.s32.totalorder %s26, 2
      %s28 = scalar_select %p27, 0, %s26
      %s29 = ssub.s32 %s16, %s28
      %s30 = ssub.s32 %s17, %s24
      %s31 = sor.u32 %s29, %s30
      %p32 = scmp.eq.s32.totalorder %s31, 0
      %s34 = sadd.s32 %s33, 1
      %s35 = scalar_select %p32, %s33, %s34
      %p38 = pneg %p32
      %p39 = scmp.eq.s32.totalorder %s9, 17
      %p40 = por %p38, %p39
      %p41 = scmp.ne.s32.totalorder %s33, %s36
      %p42 = scmp.eq.s32.totalorder %s9, 0
      %p43 = por %p41, %p42
      %p44 = scmp.ne.s32.totalorder %s33, %s36
      %p45 = scmp.eq.s32.totalorder %s14, 17
      %p46 = por %p44, %p45
      %p47 = scmp.ne.s32.totalorder %s36, %s37
      %p48 = scmp.eq.s32.totalorder %s14, 0
      %p49 = por %p47, %p48
      %p50 = scmp.ne.s32.totalorder %s36, %s37
      %p51 = scmp.eq.s32.totalorder %s15, 17
      %p52 = por %p50, %p51
      %p54 = scmp.ne.s32.totalorder %s37, %s53
      %p55 = scmp.eq.s32.totalorder %s15, 0
      %p56 = por %p54, %p55
      %s57 = ssub.s32 %s17, %s24
      %p58 = scmp.eq.s32.totalorder %s57, 0
      %s60 = sadd.s32 %s59, 1
      %s61 = scalar_select %p58, %s59, %s60
      %p64 = pneg %p58
      %p65 = scmp.eq.s32.totalorder %s9, 17
      %p66 = por %p64, %p65
      %p67 = scmp.ne.s32.totalorder %s59, %s62
      %p68 = scmp.eq.s32.totalorder %s9, 0
      %p69 = por %p67, %p68
      %p70 = scmp.ne.s32.totalorder %s59, %s62
      %p71 = scmp.eq.s32.totalorder %s14, 17
      %p72 = por %p70, %p71
      %p73 = scmp.ne.s32.totalorder %s62, %s63
      %p74 = scmp.eq.s32.totalorder %s14, 0
      %p75 = por %p73, %p74
      %p76 = scmp.ne.s32.totalorder %s62, %s63
      %p77 = scmp.eq.s32.totalorder %s15, 17
      %p78 = por %p76, %p77
      %p80 = scmp.ne.s32.totalorder %s63, %s79
      %p81 = scmp.eq.s32.totalorder %s15, 0
      %p82 = por %p80, %p81
      %s83 = ssub.s32 %s16, %s28
      %p84 = scmp.eq.s32.totalorder %s83, 0
      %s86 = sadd.s32 %s85, 1
      %s87 = scalar_select %p84, %s85, %s86
      %p90 = pneg %p84
      %p91 = scmp.eq.s32.totalorder %s9, 17
      %p92 = por %p90, %p91
      %p93 = scmp.ne.s32.totalorder %s85, %s88
      %p94 = scmp.eq.s32.totalorder %s9, 0
      %p95 = por %p93, %p94
      %p96 = scmp.ne.s32.totalorder %s85, %s88
      %p97 = scmp.eq.s32.totalorder %s14, 17
      %p98 = por %p96, %p97
      %p99 = scmp.ne.s32.totalorder %s88, %s89
      %p100 = scmp.eq.s32.totalorder %s14, 0
      %p101 = por %p99, %p100
      %p102 = scmp.ne.s32.totalorder %s88, %s89
      %p103 = scmp.eq.s32.totalorder %s15, 17
      %p104 = por %p102, %p103
      %p106 = scmp.ne.s32.totalorder %s89, %s105
      %p107 = scmp.eq.s32.totalorder %s15, 0
      %p108 = por %p106, %p107
      %s109 = ssub.s32 %s16, %s28
      %p110 = scmp.eq.s32.totalorder %s109, 0
      %s112 = sadd.s32 %s111, 1
      %s113 = scalar_select %p110, %s111, %s112
      %p116 = pneg %p110
      %p117 = scmp.eq.s32.totalorder %s9, 17
      %p118 = por %p116, %p117
      %p119 = scmp.ne.s32.totalorder %s111, %s114
      %p120 = scmp.eq.s32.totalorder %s9, 0
      %p121 = por %p119, %p120
      %p122 = scmp.ne.s32.totalorder %s111, %s114
      %p123 = scmp.eq.s32.totalorder %s14, 17
      %p124 = por %p122, %p123
      %p125 = scmp.ne.s32.totalorder %s114, %s115
      %p126 = scmp.eq.s32.totalorder %s14, 0
      %p127 = por %p125, %p126
      %p128 = scmp.ne.s32.totalorder %s114, %s115
      %p129 = scmp.eq.s32.totalorder %s15, 17
      %p130 = por %p128, %p129
      %p132 = scmp.ne.s32.totalorder %s115, %s131
      %p133 = scmp.eq.s32.totalorder %s15, 0
      %p134 = por %p132, %p133
      %p135 = scmp.le.s32.totalorder 1, %s9
      %p136 = scmp.lt.s32.totalorder %s9, 19
      %p137 = pnand %p135, %p136
      %p138 = pneg %p137
      // Predicated region
      $region9: #{network_block_forward.7} parent=5 // pred_check
        _
      $region10: #{network_block_forward.7} parent=5 // pred_check_branch
        %140 = sbr.rel (%p137) target = $region12
      $region11: #{network_block_forward.7} parent=5 // pred_region
        %s141 = ssub.s32 %s9, 1
      $region12: #{network_block_forward.7} parent=5 // pred_fallthru
        _
      %p142 = scmp.lt.s32.totalorder %s9, 18
      // Predicated region
      $region13: #{network_block_forward.7} parent=5 // pred_check
        %p143 = pneg %p142
      $region14: #{network_block_forward.7} parent=5 // pred_check_branch
        %145 = sbr.rel (%p143) target = $region16
      $region15: #{network_block_forward.7} parent=5 // pred_region
        // Predicated region
        $region17: #{network_block_forward.7} parent=15 // pred_check
          %p146 = pneg %p43
        $region18: #{network_block_forward.7} parent=15 // pred_check_branch
          %148 = sbr.rel (%p146) target = $region20
        $region19: #{network_block_forward.7} parent=15 // pred_region
          %s149 = sand.u32 %s33, 1
          %s150 = sand.u32 %s33, 1
          %s151 = smul.addr %s150, 32
          %s152 = scalar_lea.vmem [#allocation3], %s151
          %s153 = smul.u32 8, %s16
          %s154 = smul.addr %s153, 9
          %s155 = sadd.s32 %s17, %s154
          %s156 = smul.addr %s155, 4
          %s157 = scalar_lea.vmem %s0, %s156
          // Predicated region
          $region21: #{network_block_forward.7} parent=19 // pred_check
            _
          $region22: #{network_block_forward.7} parent=19 // pred_check_branch
            %159 = sbr.rel (0) target = $region24
          $region23: #{network_block_forward.7} parent=19 // pred_region
            // Predicated region
            $region25: #{network_block_forward.7} parent=23 // pred_check
              _
            $region26: #{network_block_forward.7} parent=23 // pred_check_branch
              %161 = sbr.rel target = $region28
            $region27: #{network_block_forward.7} parent=23 // pred_region
              // Predicated region
              $region40: #{network_block_forward.7} parent=27 // pred_check
                _
              $region41: #{network_block_forward.7} parent=27 // pred_check_branch
                %190 = sbr.rel (0) target = $region43
              $region42: #{network_block_forward.7} parent=27 // pred_region
                loop: start=0, step=1, limit=1
                $region44: #{network_block_forward.7} parent=42 // loop_pre_header
                  _
                $region45: #{network_block_forward.7} parent=42 // loop_header
                  %s192 = sphi 0, %s196
                  %p193 = scmp.ge.s32.totalorder %s192, 1
                  %s197 = sphi %s157, %s157
                  %s198 = sphi %s152, %s152
                $region46: #{network_block_forward.7} parent=42 // loop_header_branch
                  %195 = sbr.rel (%p193) target = $region50
                $region47: #{network_block_forward.7} parent=42 // loop_body
                  _
                $region48: #{network_block_forward.7} parent=42 // loop_footer
                  %s196 = sadd.s32 1, %s192
                $region49: #{network_block_forward.7} parent=42 // loop_footer_branch
                  %191 = sbr.rel target = $region45
                $region50: #{network_block_forward.7} parent=42 // loop_exit
                  _
                loop: start=0, step=1, limit=1
                $region51: #{network_block_forward.7} parent=42 // loop_pre_header
                  _
                $region52: #{network_block_forward.7} parent=42 // loop_header
                  %s201 = sphi 0, %s205
                  %p202 = scmp.ge.s32.totalorder %s201, 1
                  %s206 = sphi %s157, %s157
                  %s207 = sphi %s152, %s152
                $region53: #{network_block_forward.7} parent=42 // loop_header_branch
                  %204 = sbr.rel (%p202) target = $region57
                $region54: #{network_block_forward.7} parent=42 // loop_body
                  %v208 = vld [vmem:[%s206] sm:$0xf]
                  %209 = vst [vmem:[%s207] sm:$0xf] %v208
                  %v210 = vld [vmem:[%s206 + $0x24] sm:$0xf]
                  %211 = vst [vmem:[%s207 + $0x4] sm:$0xf] %v210
                  %v212 = vld [vmem:[%s206 + $0x48] sm:$0xf]
                  %213 = vst [vmem:[%s207 + $0x8] sm:$0xf] %v212
                  %v214 = vld [vmem:[%s206 + $0x6c] sm:$0xf]
                  %215 = vst [vmem:[%s207 + $0xc] sm:$0xf] %v214
                  %v216 = vld [vmem:[%s206 + $0x90] sm:$0xf]
                  %217 = vst [vmem:[%s207 + $0x10] sm:$0xf] %v216
                  %v218 = vld [vmem:[%s206 + $0xb4] sm:$0xf]
                  %219 = vst [vmem:[%s207 + $0x14] sm:$0xf] %v218
                  %v220 = vld [vmem:[%s206 + $0xd8] sm:$0xf]
                  %221 = vst [vmem:[%s207 + $0x18] sm:$0xf] %v220
                  %v222 = vld [vmem:[%s206 + $0xfc] sm:$0xf]
                  %223 = vst [vmem:[%s207 + $0x1c] sm:$0xf] %v222
                $region55: #{network_block_forward.7} parent=42 // loop_footer
                  %s205 = sadd.s32 1, %s201
                $region56: #{network_block_forward.7} parent=42 // loop_footer_branch
                  %200 = sbr.rel target = $region52
                $region57: #{network_block_forward.7} parent=42 // loop_exit
                  _
              $region43: #{network_block_forward.7} parent=27 // pred_fallthru
                _
            $region28: #{network_block_forward.7} parent=23 // pred_fallthru
              _
            // Predicated region
            $region29: #{network_block_forward.7} parent=23 // pred_check
              _
            $region30: #{network_block_forward.7} parent=23 // pred_check_branch
              %163 = sbr.rel (0) target = $region32
            $region31: #{network_block_forward.7} parent=23 // pred_region
              loop: start=0, step=1, limit=1
              $region33: #{network_block_forward.7} parent=31 // loop_pre_header
                _
              $region34: #{network_block_forward.7} parent=31 // loop_header
                %s166 = sphi 0, %s170
                %p167 = scmp.ge.s32.totalorder %s166, 1
                %s171 = sphi %s157, %s157
                %s172 = sphi %s152, %s152
              $region35: #{network_block_forward.7} parent=31 // loop_header_branch
                %169 = sbr.rel (%p167) target = $region39
              $region36: #{network_block_forward.7} parent=31 // loop_body
                %v173 = vld [vmem:[%s171] sm:$0xf]
                %174 = vst [vmem:[%s172] sm:$0xf] %v173
                %v175 = vld [vmem:[%s171 + $0x24] sm:$0xf]
                %176 = vst [vmem:[%s172 + $0x4] sm:$0xf] %v175
                %v177 = vld [vmem:[%s171 + $0x48] sm:$0xf]
                %178 = vst [vmem:[%s172 + $0x8] sm:$0xf] %v177
                %v179 = vld [vmem:[%s171 + $0x6c] sm:$0xf]
                %180 = vst [vmem:[%s172 + $0xc] sm:$0xf] %v179
                %v181 = vld [vmem:[%s171 + $0x90] sm:$0xf]
                %182 = vst [vmem:[%s172 + $0x10] sm:$0xf] %v181
                %v183 = vld [vmem:[%s171 + $0xb4] sm:$0xf]
                %184 = vst [vmem:[%s172 + $0x14] sm:$0xf] %v183
                %v185 = vld [vmem:[%s171 + $0xd8] sm:$0xf]
                %186 = vst [vmem:[%s172 + $0x18] sm:$0xf] %v185
                %v187 = vld [vmem:[%s171 + $0xfc] sm:$0xf]
                %188 = vst [vmem:[%s172 + $0x1c] sm:$0xf] %v187
              $region37: #{network_block_forward.7} parent=31 // loop_footer
                %s170 = sadd.s32 1, %s166
              $region38: #{network_block_forward.7} parent=31 // loop_footer_branch
                %165 = sbr.rel target = $region34
              $region39: #{network_block_forward.7} parent=31 // loop_exit
                _
            $region32: #{network_block_forward.7} parent=23 // pred_fallthru
              _
          $region24: #{network_block_forward.7} parent=19 // pred_fallthru
            _
          %224 = vnop
        $region20: #{network_block_forward.7} parent=15 // pred_fallthru
          _
        // Predicated region
        $region58: #{network_block_forward.7} parent=15 // pred_check
          %p225 = pneg %p69
        $region59: #{network_block_forward.7} parent=15 // pred_check_branch
          %227 = sbr.rel (%p225) target = $region61
        $region60: #{network_block_forward.7} parent=15 // pred_region
          %s228 = smul.u32 16, %s17
          %p229 = scmp.lt.s32.totalorder %s228, 143
          %s230 = scalar_select %p229, %s228, 143
          %s231 = smul.addr %s230, 4
          %s232 = scalar_lea.vmem %s1, %s231
          %s233 = smul.u32 16, %s17
        $region61: #{network_block_forward.7} parent=15 // pred_fallthru
          _
        // Predicated region
        $region62: #{network_block_forward.7} parent=15 // pred_check
          %p234 = pneg %p95
        $region63: #{network_block_forward.7} parent=15 // pred_check_branch
          %236 = sbr.rel (%p234) target = $region65
        $region64: #{network_block_forward.7} parent=15 // pred_region
          %s237 = smul.u32 8, %s16
          %p238 = scmp.lt.s32.totalorder %s237, 15
          %s239 = scalar_select %p238, %s237, 15
          %s240 = smul.addr %s239, 8
          %s241 = scalar_lea.vmem %s2, %s240
          %s242 = smul.u32 8, %s16
        $region65: #{network_block_forward.7} parent=15 // pred_fallthru
          _
      $region16: #{network_block_forward.7} parent=5 // pred_fallthru
        _
      %p243 = scmp.le.s32.totalorder 1, %s9
      %p244 = scmp.lt.s32.totalorder %s9, 19
      %p245 = pnand %p243, %p244
      %p246 = pneg %p245
      // Predicated region
      $region66: #{network_block_forward.7} parent=5 // pred_check
        _
      $region67: #{network_block_forward.7} parent=5 // pred_check_branch
        %248 = sbr.rel (%p245) target = $region69
      $region68: #{network_block_forward.7} parent=5 // pred_region
        %s249 = ssub.s32 %s9, 1
        %s250 = sand.u32 %s36, 1
        %s251 = sand.u32 %s36, 1
        %s252 = smul.addr %s251, 32
        %s253 = scalar_lea.vmem [#allocation3], %s252
        // Predicated region
        $region70: #{network_block_forward.7} parent=68 // pred_check
          %p254 = pneg %p49
        $region71: #{network_block_forward.7} parent=68 // pred_check_branch
          %256 = sbr.rel (%p254) target = $region73
        $region72: #{network_block_forward.7} parent=68 // pred_region
          _
        $region73: #{network_block_forward.7} parent=68 // pred_fallthru
          _
        %s257 = sand.u32 %s36, 1
        %s258 = sand.u32 %s36, 1
        %s259 = smul.addr %s258, 32
        %s260 = scalar_lea.vmem [#allocation3], %s259
        %p261 = pneg %p49
        %p262 = pneg %p46
        %s263 = smul.u32 16, %s19
        %p264 = scmp.lt.s32.totalorder %s263, 143
        %s265 = scalar_select %p264, %s263, 143
        %s266 = smul.addr %s265, 4
        %s267 = scalar_lea.vmem %s1, %s266
        %p268 = pneg %p75
        %p269 = pneg %p72
        %s270 = smul.u32 8, %s18
        %p271 = scmp.lt.s32.totalorder %s270, 15
        %s272 = scalar_select %p271, %s270, 15
        %s273 = smul.addr %s272, 8
        %s274 = scalar_lea.vmem %s2, %s273
        %p275 = pneg %p101
        %p276 = pneg %p98
        %p277 = pneg %p127
        %p278 = pneg %p124
        %s279 = smul.u32 8, %s18
        %p280 = scmp.lt.s32.totalorder %s279, 15
        %s281 = scalar_select %p280, %s279, 15
        %s282 = smul.addr %s281, 8
        %s283 = scalar_lea.vmem %s3, %s282
        %s284 = smul.u32 8, %s18
        %s285 = smul.u32 16, %s19
        %p286 = scmp.lt.s32.totalorder %s285, 143
        %s287 = scalar_select %p286, %s285, 143
        %s288 = smul.addr %s287, 4
        %s289 = scalar_lea.vmem %s1, %s288
        %s290 = smul.u32 16, %s19
        %s291 = smul.u32 8, %s18
        %p292 = scmp.lt.s32.totalorder %s291, 15
        %s293 = scalar_select %p292, %s291, 15
        %s294 = smul.addr %s293, 8
        %s295 = scalar_lea.vmem %s2, %s294
        %s296 = smul.u32 8, %s18
        %s297 = smul.u32 8, %s18
        %p298 = scmp.lt.s32.totalorder %s297, 15
        %s299 = scalar_select %p298, %s297, 15
        %s300 = smul.addr %s299, 8
        %s301 = scalar_lea.vmem %s3, %s300
        %s302 = smul.u32 8, %s18
        %p304 = scmp.eq.s32.totalorder %s19, 0
        // Predicated region
        $region74: #{network_block_forward.7} parent=68 // pred_check
          %p305 = pneg %p304
        $region75: #{network_block_forward.7} parent=68 // pred_check_branch
          %307 = sbr.rel (%p305) target = $region77
        $region76: #{network_block_forward.7} parent=68 // pred_region
          %308 = vst [vmem:[#allocation2] sm:$0xff] 0.0
          %309 = vst [vmem:[#allocation2 + $0x8] sm:$0xff] 0.0
          %310 = vst [vmem:[#allocation2 + $0x10] sm:$0xff] 0.0
          %311 = vst [vmem:[#allocation2 + $0x18] sm:$0xff] 0.0
          %312 = vst [vmem:[#allocation2 + $0x20] sm:$0xff] 0.0
          %313 = vst [vmem:[#allocation2 + $0x28] sm:$0xff] 0.0
          %314 = vst [vmem:[#allocation2 + $0x30] sm:$0xff] 0.0
          %315 = vst [vmem:[#allocation2 + $0x38] sm:$0xff] 0.0
        $region77: #{network_block_forward.7} parent=68 // pred_fallthru
          _
        %v316 = vld [vmem:[%s253] sm:$0xf]
        %v317 = vld [vmem:[%s253 + $0x4] sm:$0xf]
        %v318 = vld [vmem:[%s253 + $0x8] sm:$0xf]
        %v319 = vld [vmem:[%s253 + $0xc] sm:$0xf]
        %v320 = vld [vmem:[%s253 + $0x10] sm:$0xf]
        %v321 = vld [vmem:[%s253 + $0x14] sm:$0xf]
        %v322 = vld [vmem:[%s253 + $0x18] sm:$0xf]
        %v323 = vld [vmem:[%s253 + $0x1c] sm:$0xf]
        %v324 = vld [vmem:[#allocation2] sm:$0xff]
        %v325 = vld [vmem:[#allocation2 + $0x8] sm:$0xff]
        %v326 = vld [vmem:[#allocation2 + $0x10] sm:$0xff]
        %v327 = vld [vmem:[#allocation2 + $0x18] sm:$0xff]
        %v328 = vld [vmem:[#allocation2 + $0x20] sm:$0xff]
        %v329 = vld [vmem:[#allocation2 + $0x28] sm:$0xff]
        %v330 = vld [vmem:[#allocation2 + $0x30] sm:$0xff]
        %v331 = vld [vmem:[#allocation2 + $0x38] sm:$0xff]
        %v332 = vld [vmem:[%s289] sm:$0xf]
        %v333 = vld [vmem:[%s289 + $0x4] sm:$0xf]
        %v334 = vld [vmem:[%s289 + $0x8] sm:$0xf]
        %v335 = vld [vmem:[%s289 + $0xc] sm:$0xf]
        %v336 = vld [vmem:[%s289 + $0x10] sm:$0xf]
        %v337 = vld [vmem:[%s289 + $0x14] sm:$0xf]
        %v338 = vld [vmem:[%s289 + $0x18] sm:$0xf]
        %v339 = vld [vmem:[%s289 + $0x1c] sm:$0xf]
        %v340 = vld [vmem:[%s289 + $0x20] sm:$0xf]
        %v341 = vld [vmem:[%s289 + $0x24] sm:$0xf]
        %v342 = vld [vmem:[%s289 + $0x28] sm:$0xf]
        %v343 = vld [vmem:[%s289 + $0x2c] sm:$0xf]
        %v344 = vld [vmem:[%s289 + $0x30] sm:$0xf]
        %v345 = vld [vmem:[%s289 + $0x34] sm:$0xf]
        %v346 = vld [vmem:[%s289 + $0x38] sm:$0xf]
        %v347 = vld [vmem:[%s289 + $0x3c] sm:$0xf]
        %v356 = vunpack.c.l.b16 %v316
        %v357 = vunpack.c.l.b16 %v317
        %v358 = vunpack.c.l.b16 %v318
        %v359 = vunpack.c.l.b16 %v319
        %v360 = vunpack.c.l.b16 %v320
        %v361 = vunpack.c.l.b16 %v321
        %v362 = vunpack.c.l.b16 %v322
        %v363 = vunpack.c.l.b16 %v323
        %v364 = vpack.c.b16 %v357, %v356
        %v365 = vpack.c.b16 %v359, %v358
        %v366 = vpack.c.b16 %v361, %v360
        %v367 = vpack.c.b16 %v363, %v362
        %v388 = vunpack.c.l.b16 %v332
        %v389 = vunpack.c.l.b16 %v333
        %v390 = vunpack.c.l.b16 %v334
        %v391 = vunpack.c.l.b16 %v335
        %v392 = vunpack.c.l.b16 %v336
        %v393 = vunpack.c.l.b16 %v337
        %v394 = vunpack.c.l.b16 %v338
        %v395 = vunpack.c.l.b16 %v339
        %v396 = vunpack.c.l.b16 %v340
        %v397 = vunpack.c.l.b16 %v341
        %v398 = vunpack.c.l.b16 %v342
        %v399 = vunpack.c.l.b16 %v343
        %v400 = vunpack.c.l.b16 %v344
        %v401 = vunpack.c.l.b16 %v345
        %v402 = vunpack.c.l.b16 %v346
        %v403 = vunpack.c.l.b16 %v347
        %v404 = vpack.c.b16 %v389, %v388
        %v405 = vpack.c.b16 %v391, %v390
        %v406 = vpack.c.b16 %v393, %v392
        %v407 = vpack.c.b16 %v395, %v394
        %v408 = vpack.c.b16 %v397, %v396
        %v409 = vpack.c.b16 %v399, %v398
        %v410 = vpack.c.b16 %v401, %v400
        %v411 = vpack.c.b16 %v403, %v402
        %420 = vmatprep.subr.bf16.mxu0 0
        %421 = vmatpush1.bf16.msra.mxu0 %v404
        %422 = vmatprep.subr.bf16.mxu0 0
        %423 = vmatpush1.bf16.msra.mxu0 %v405
        %424 = vmatprep.subr.bf16.mxu0 0
        %425 = vmatpush1.bf16.msra.mxu0 %v406
        %426 = vmatprep.subr.bf16.mxu0 0
        %427 = vmatpush1.bf16.msra.mxu0 %v407
        %428 = vmatprep.subr.bf16.mxu0 0
        %429 = vmatpush1.bf16.msra.mxu0 %v408
        %430 = vmatprep.subr.bf16.mxu0 0
        %431 = vmatpush1.bf16.msra.mxu0 %v409
        %432 = vmatprep.subr.bf16.mxu0 0
        %433 = vmatpush1.bf16.msra.mxu0 %v410
        %434 = vmatprep.subr.bf16.mxu0 0
        %435 = vmatpush1.bf16.msra.mxu0 %v411
        %436 = vmatprep.subr.bf16.mxu0 0
        %437 = vmatpush1.bf16.msra.mxu0 0
        %438 = vmatprep.subr.bf16.mxu0 0
        %439 = vmatpush1.bf16.msra.mxu0 0
        %440 = vmatprep.subr.bf16.mxu0 0
        %441 = vmatpush1.bf16.msra.mxu0 0
        %442 = vmatprep.subr.bf16.mxu0 0
        %443 = vmatpush1.bf16.msra.mxu0 0
        %444 = vmatprep.subr.bf16.mxu0 0
        %445 = vmatpush1.bf16.msra.mxu0 0
        %446 = vmatprep.subr.bf16.mxu0 0
        %447 = vmatpush1.bf16.msra.mxu0 0
        %448 = vmatprep.subr.bf16.mxu0 0
        %449 = vmatpush1.bf16.msra.mxu0 0
        %450 = vmatprep.subr.bf16.mxu0 0
        %451 = vmatpush1.bf16.msra.mxu0 0
        %452 = vmatprep.mubr.bf16.mxu0 0
        %453 = vmatmul.mubr.bf16.gmra.mrb[0].mxu0 %v364
        %v454 = vpop.f32.mrb[0].mxu0
        %v455 = vadd.f32 0.0, %v454
        %v456 = vpop.f32.mrb[0].mxu0
        %v457 = vpop.f32.mrb[0].mxu0
        %v458 = vadd.f32 0.0, %v457
        %v459 = vpop.f32.mrb[0].mxu0
        %460 = vmatprep.mubr.bf16.mxu0 0
        %461 = vmatmul.mubr.bf16.gmra.mrb[0].mxu0 %v365
        %v462 = vpop.f32.mrb[0].mxu0
        %v463 = vadd.f32 0.0, %v462
        %v464 = vpop.f32.mrb[0].mxu0
        %v465 = vpop.f32.mrb[0].mxu0
        %v466 = vadd.f32 0.0, %v465
        %v467 = vpop.f32.mrb[0].mxu0
        %468 = vmatprep.mubr.bf16.mxu0 0
        %469 = vmatmul.mubr.bf16.gmra.mrb[0].mxu0 %v366
        %v470 = vpop.f32.mrb[0].mxu0
        %v471 = vadd.f32 0.0, %v470
        %v472 = vpop.f32.mrb[0].mxu0
        %v473 = vpop.f32.mrb[0].mxu0
        %v474 = vadd.f32 0.0, %v473
        %v475 = vpop.f32.mrb[0].mxu0
        %476 = vmatprep.mubr.bf16.mxu0 0
        %477 = vmatmul.mubr.bf16.gmra.mrb[0].mxu0 %v367
        %v478 = vpop.f32.mrb[0].mxu0
        %v479 = vadd.f32 0.0, %v478
        %v480 = vpop.f32.mrb[0].mxu0
        %v481 = vpop.f32.mrb[0].mxu0
        %v482 = vadd.f32 0.0, %v481
        %v483 = vpop.f32.mrb[0].mxu0
        %484 = vdwg.mxu0
        %v485 = vadd.f32 %v324, %v455
        %v486 = vadd.f32 %v325, %v458
        %v487 = vadd.f32 %v326, %v463
        %v488 = vadd.f32 %v327, %v466
        %v489 = vadd.f32 %v328, %v471
        %v490 = vadd.f32 %v329, %v474
        %v491 = vadd.f32 %v330, %v479
        %v492 = vadd.f32 %v331, %v482
        %493 = vst [vmem:[#allocation2] sm:$0xff] %v485
        %494 = vst [vmem:[#allocation2 + $0x8] sm:$0xff] %v486
        %495 = vst [vmem:[#allocation2 + $0x10] sm:$0xff] %v487
        %496 = vst [vmem:[#allocation2 + $0x18] sm:$0xff] %v488
        %497 = vst [vmem:[#allocation2 + $0x20] sm:$0xff] %v489
        %498 = vst [vmem:[#allocation2 + $0x28] sm:$0xff] %v490
        %499 = vst [vmem:[#allocation2 + $0x30] sm:$0xff] %v491
        %500 = vst [vmem:[#allocation2 + $0x38] sm:$0xff] %v492
        %p501 = scmp.eq.s32.totalorder %s19, 8
        // Predicated region
        $region78: #{network_block_forward.7} parent=68 // pred_check
          %p502 = pneg %p501
        $region79: #{network_block_forward.7} parent=68 // pred_check_branch
          %504 = sbr.rel (%p502) target = $region81
        $region80: #{network_block_forward.7} parent=68 // pred_region
          %v505 = vld [vmem:[#allocation2] sm:$0xff]
          %v506 = vld [vmem:[#allocation2 + $0x8] sm:$0xff]
          %v507 = vld [vmem:[#allocation2 + $0x10] sm:$0xff]
          %v508 = vld [vmem:[#allocation2 + $0x18] sm:$0xff]
          %v509 = vld [vmem:[#allocation2 + $0x20] sm:$0xff]
          %v510 = vld [vmem:[#allocation2 + $0x28] sm:$0xff]
          %v511 = vld [vmem:[#allocation2 + $0x30] sm:$0xff]
          %v512 = vld [vmem:[#allocation2 + $0x38] sm:$0xff]
          %v513 = vld [vmem:[%s295] sm:$0xff]
          %v514 = vld [vmem:[%s295 + $0x8] sm:$0xff]
          %v515 = vld [vmem:[%s295 + $0x10] sm:$0xff]
          %v516 = vld [vmem:[%s295 + $0x18] sm:$0xff]
          %v517 = vld [vmem:[%s295 + $0x20] sm:$0xff]
          %v518 = vld [vmem:[%s295 + $0x28] sm:$0xff]
          %v519 = vld [vmem:[%s295 + $0x30] sm:$0xff]
          %v520 = vld [vmem:[%s295 + $0x38] sm:$0xff]
          %v521 = vadd.f32 %v505, %v513
          %v522 = vadd.f32 %v506, %v514
          %v523 = vadd.f32 %v507, %v515
          %v524 = vadd.f32 %v508, %v516
          %v525 = vadd.f32 %v509, %v517
          %v526 = vadd.f32 %v510, %v518
          %v527 = vadd.f32 %v511, %v519
          %v528 = vadd.f32 %v512, %v520
          %529 = vst [vmem:[%s301] sm:$0xff] %v521
          %530 = vst [vmem:[%s301 + $0x8] sm:$0xff] %v522
          %531 = vst [vmem:[%s301 + $0x10] sm:$0xff] %v523
          %532 = vst [vmem:[%s301 + $0x18] sm:$0xff] %v524
          %533 = vst [vmem:[%s301 + $0x20] sm:$0xff] %v525
          %534 = vst [vmem:[%s301 + $0x28] sm:$0xff] %v526
          %535 = vst [vmem:[%s301 + $0x30] sm:$0xff] %v527
          %536 = vst [vmem:[%s301 + $0x38] sm:$0xff] %v528
        $region81: #{network_block_forward.7} parent=68 // pred_fallthru
          _
        %s537 = smul.u32 8, %s18
        %p538 = scmp.lt.s32.totalorder %s537, 15
        %s539 = scalar_select %p538, %s537, 15
        %s540 = smul.addr %s539, 8
        %s541 = scalar_lea.vmem %s3, %s540
        // Predicated region
        $region82: #{network_block_forward.7} parent=68 // pred_check
          %p542 = pneg %p124
        $region83: #{network_block_forward.7} parent=68 // pred_check_branch
          %544 = sbr.rel (%p542) target = $region85
        $region84: #{network_block_forward.7} parent=68 // pred_region
          %s545 = smul.u32 8, %s18
        $region85: #{network_block_forward.7} parent=68 // pred_fallthru
          _
      $region69: #{network_block_forward.7} parent=5 // pred_fallthru
        _
      %p546 = scmp.le.s32.totalorder 2, %s9
      // Predicated region
      $region86: #{network_block_forward.7} parent=5 // pred_check
        %p547 = pneg %p546
      $region87: #{network_block_forward.7} parent=5 // pred_check_branch
        %549 = sbr.rel (%p547) target = $region89
      $region88: #{network_block_forward.7} parent=5 // pred_region
        %s550 = ssub.s32 %s9, 2
        // Predicated region
        $region90: #{network_block_forward.7} parent=88 // pred_check
          %p551 = pneg %p130
        $region91: #{network_block_forward.7} parent=88 // pred_check_branch
          %553 = sbr.rel (%p551) target = $region93
        $region92: #{network_block_forward.7} parent=88 // pred_region
          %s554 = smul.u32 8, %s20
          %p555 = scmp.lt.s32.totalorder %s554, 15
          %s556 = scalar_select %p555, %s554, 15
          %s557 = smul.addr %s556, 8
          %s558 = scalar_lea.vmem %s3, %s557
        $region93: #{network_block_forward.7} parent=88 // pred_fallthru
          _
      $region89: #{network_block_forward.7} parent=5 // pred_fallthru
        _
    $region6: #{network_block_forward.7} parent=1 // loop_footer
      %s13 = sadd.s32 1, %s9
    $region7: #{network_block_forward.7} parent=1 // loop_footer_branch
      %8 = sbr.rel target = $region3
    $region8: #{network_block_forward.7} parent=1 // loop_exit
      _

</llo_original>
